<compile_context>
chip_gen: v6e
topology: v6e:2x2x1
jax: 0.10.0
libtpu: 0.0.40
codegen_flags: <defaults>
</compile_context>

<pallas_src>
import jax
import jax.numpy as jnp
from jax.experimental import pallas as pl
from jax.experimental.pallas import tpu as pltpu


def _resblock_kernel(x_ref, wb1_ref, b1_ref, wb2_ref, b2_ref, o_ref):
    # x_ref  : (B_blk, H, W*C)  input images, width/channels fused (lane-dense)
    # wb*_ref: (3*W*C, W*C)     stacked banded conv weights (bf16)
    # b*_ref : (1, W*C)         bias tiled across W (f32)
    # o_ref  : (B_blk, H, W*C)  output
    B, H, WC = x_ref.shape
    M = B * H

    x = x_ref[...].reshape(M, WC).astype(jnp.float32)

    # Per-image row index; masks hoisted once and shared by both convs.
    r = jax.lax.broadcasted_iota(jnp.int32, (M, WC), 0) % H
    mask_top = r >= 1          # row y-1 exists inside the same image
    mask_bot = r <= H - 2      # row y+1 exists inside the same image

    def conv3x3(lhs, wbig_ref, b_ref):
        # lhs: (M, WC) f32.  Shift/mask the INPUT copies (rolls are XLU, shifts
        # must be non-negative: M-1 == cyclic -1, wrap rows are masked to 0),
        # concatenate along lanes, and do ONE K = 3*WC bf16 MXU contraction.
        up = jnp.where(mask_top, pltpu.roll(lhs, shift=1, axis=0), 0.0)
        dn = jnp.where(mask_bot, pltpu.roll(lhs, shift=M - 1, axis=0), 0.0)
        lhs_big = jnp.concatenate([up, lhs, dn], axis=-1).astype(jnp.bfloat16)
        out = jnp.dot(lhs_big, wbig_ref[...],
                      preferred_element_type=jnp.float32)
        return out + b_ref[...]

    h = conv3x3(x, wb1_ref, b1_ref)
    h = jnp.maximum(h, 0.2 * h)                      # LeakyReLU(0.2)
    y = conv3x3(h, wb2_ref, b2_ref)
    o_ref[...] = (y + x).reshape(B, H, WC).astype(o_ref.dtype)


def _make_banded_weights(w_hwio, width):
    """(3, 3, C, C) HWIO -> (3*width*C, width*C) f32 stacked banded matrices.

    band[ky][(x+kx-1)*C + ci, x*C + co] = w[ky, kx, ci, co]; width zero-padding
    is realised as missing bands at the edges.  Bands for ky = 0, 1, 2 are
    stacked along K so a single matmul against [in[y-1] | in[y] | in[y+1]]
    computes the full 3x3 conv row.
    """
    C = w_hwio.shape[-1]
    bands = []
    for ky in range(3):
        wb = jnp.zeros((width * C, width * C), jnp.float32)
        for kx in range(3):
            shift = jnp.eye(width, k=-(kx - 1), dtype=jnp.float32)
            wb = wb + jnp.kron(shift, w_hwio[ky, kx].astype(jnp.float32))
        bands.append(wb)
    return jnp.concatenate(bands, axis=0)            # (3*W*C, W*C)


@jax.jit
def resblock_nhwc(x_nhwc, w1, b1, w2, b2):
    """x_nhwc: (N, H, W, C); w*: (3, 3, C, C) HWIO; b*: (C,)."""
    N, H, W, C = x_nhwc.shape
    WC = W * C

    # Batch-block size: aim for ~256 matmul rows per grid step (MXU / DMA
    # efficiency) while keeping >= 2 grid steps when N allows it (v7x megacore).
    b_blk = max(1, min(max(1, 256 // H), -(-N // 2)))
    n_blocks = -(-N // b_blk)
    n_pad = n_blocks * b_blk

    x2d = x_nhwc.reshape(N, H, WC)                   # free: C is innermost
    if n_pad != N:
        x2d = jnp.pad(x2d, ((0, n_pad - N), (0, 0), (0, 0)))

    wb1 = _make_banded_weights(w1, W).astype(jnp.bfloat16)
    wb2 = _make_banded_weights(w2, W).astype(jnp.bfloat16)
    b1t = jnp.tile(b1.astype(jnp.float32), W).reshape(1, WC)
    b2t = jnp.tile(b2.astype(jnp.float32), W).reshape(1, WC)

    grid_spec = pltpu.PrefetchScalarGridSpec(
        num_scalar_prefetch=0,
        grid=(n_blocks,),
        in_specs=[
            pl.BlockSpec((b_blk, H, WC), lambda n: (n, 0, 0)),
            pl.BlockSpec((3 * WC, WC), lambda n: (0, 0)),
            pl.BlockSpec((1, WC), lambda n: (0, 0)),
            pl.BlockSpec((3 * WC, WC), lambda n: (0, 0)),
            pl.BlockSpec((1, WC), lambda n: (0, 0)),
        ],
        out_specs=pl.BlockSpec((b_blk, H, WC), lambda n: (n, 0, 0)),
    )

    y2d = pl.pallas_call(
        _resblock_kernel,
        out_shape=jax.ShapeDtypeStruct((n_pad, H, WC), x_nhwc.dtype),
        grid_spec=grid_spec,
        compiler_params=pltpu.CompilerParams(
            dimension_semantics=("parallel",),
            vmem_limit_bytes=32 * 1024 * 1024),
    )(x2d, wb1, b1t, wb2, b2t)

    return y2d[:N].reshape(N, H, W, C)


def resblock_nchw(x_nchw, w1_oihw, b1, w2_oihw, b2):
    """PyTorch-convention entry point: x (N,C,H,W), weights (Cout,Cin,3,3)."""
    x_nhwc = jnp.transpose(x_nchw, (0, 2, 3, 1))
    w1 = jnp.transpose(w1_oihw, (2, 3, 1, 0))        # OIHW -> HWIO
    w2 = jnp.transpose(w2_oihw, (2, 3, 1, 0))
    y = resblock_nhwc(x_nhwc, w1, b1, w2, b2)
    return jnp.transpose(y, (0, 3, 1, 2))


def _reference_nhwc(x, w1, b1, w2, b2):
    dn = ("NHWC", "HWIO", "NHWC")
    h = jax.lax.conv_general_dilated(x, w1, (1, 1), "SAME",
                                     dimension_numbers=dn) + b1
    h = jnp.where(h > 0, h, 0.2 * h)
    h = jax.lax.conv_general_dilated(h, w2, (1, 1), "SAME",
                                     dimension_numbers=dn) + b2
    return h + x


if __name__ == "__main__":
    # ResBlock defaults: in_channels = out_channels = 16 (required for the
    # residual add).  Small spatial size for the demo.
    N, C, H, W = 2, 16, 16, 16

    key = jax.random.PRNGKey(0)
    k_x, k_w1, k_b1, k_w2, k_b2 = jax.random.split(key, 5)

    x_nchw = jax.random.normal(k_x, (N, C, H, W), jnp.float32)
    scale = 1.0 / jnp.sqrt(C * 3 * 3)
    w1_oihw = jax.random.uniform(k_w1, (C, C, 3, 3), jnp.float32, -scale, scale)
    b1 = jax.random.uniform(k_b1, (C,), jnp.float32, -scale, scale)
    w2_oihw = jax.random.uniform(k_w2, (C, C, 3, 3), jnp.float32, -scale, scale)
    b2 = jax.random.uniform(k_b2, (C,), jnp.float32, -scale, scale)

    y = resblock_nchw(x_nchw, w1_oihw, b1, w2_oihw, b2)
    y = jax.block_until_ready(y)

    # Cross-check against a pure-JAX (XLA conv, full f32) reference.  The
    # kernel's matmul operands are bf16, so the tolerance is loosened slightly.
    x_nhwc = jnp.transpose(x_nchw, (0, 2, 3, 1))
    ref = _reference_nhwc(x_nhwc,
                          jnp.transpose(w1_oihw, (2, 3, 1, 0)), b1,
                          jnp.transpose(w2_oihw, (2, 3, 1, 0)), b2)
    ref = jnp.transpose(ref, (0, 3, 1, 2))
    assert y.shape == x_nchw.shape
    err = float(jnp.max(jnp.abs(y - ref)))
    assert jnp.allclose(y, ref, atol=5e-2, rtol=5e-2), err

    print("KERNEL_OK")
</pallas_src>

<mosaic_0001>
module attributes {stable_mosaic.version = 11 : i64} {
  func.func @_resblock_kernel(%arg0: i32, %arg1: memref<1x16x256xf32, #tpu.memory_space<vmem>>, %arg2: memref<768x256xbf16, #tpu.memory_space<vmem>>, %arg3: memref<1x256xf32, #tpu.memory_space<vmem>>, %arg4: memref<768x256xbf16, #tpu.memory_space<vmem>>, %arg5: memref<1x256xf32, #tpu.memory_space<vmem>>, %arg6: memref<1x16x256xf32, #tpu.memory_space<vmem>>) attributes {dimension_semantics = [#tpu.dimension_semantics<parallel>], iteration_bounds = array<i64: 2>, scalar_prefetch = 0 : i64, scratch_operands = 0 : i64, tpu.core_type = #tpu.core_type<tc>, window_params = [{transform_indices = @transform_0, window_bounds = array<i64: 1, 16, 256>}, {pipeline_mode = #tpu.pipeline_mode<synchronous>, transform_indices = @transform_1, window_bounds = array<i64: 768, 256>}, {pipeline_mode = #tpu.pipeline_mode<synchronous>, transform_indices = @transform_2, window_bounds = array<i64: 1, 256>}, {pipeline_mode = #tpu.pipeline_mode<synchronous>, transform_indices = @transform_3, window_bounds = array<i64: 768, 256>}, {pipeline_mode = #tpu.pipeline_mode<synchronous>, transform_indices = @transform_4, window_bounds = array<i64: 1, 256>}, {transform_indices = @transform_5, window_bounds = array<i64: 1, 16, 256>}]} {
    %c0 = arith.constant 0 : index
    %c0_0 = arith.constant 0 : index
    %c0_1 = arith.constant 0 : index
    %0 = vector.load %arg1[%c0, %c0_0, %c0_1] : memref<1x16x256xf32, #tpu.memory_space<vmem>>, vector<1x16x256xf32>
    %1 = vector.shape_cast %0 : vector<1x16x256xf32> to vector<16x256xf32>
    %2 = tpu.iota {dimensions = array<i32: 0>} : vector<16x256xi32>
    %c16_i32 = arith.constant 16 : i32
    %c0_i32 = arith.constant 0 : i32
    %3 = arith.cmpi eq, %c16_i32, %c0_i32 : i32
    %c1_i32 = arith.constant 1 : i32
    %4 = arith.select %3, %c1_i32, %c16_i32 : i32
    %5 = vector.broadcast %4 : i32 to vector<16x256xi32>
    %6 = arith.remsi %2, %5 : vector<16x256xi32>
    %c0_i32_2 = arith.constant 0 : i32
    %7 = vector.broadcast %c0_i32_2 : i32 to vector<16x256xi32>
    %8 = arith.cmpi ne, %6, %7 : vector<16x256xi32>
    %c0_i32_3 = arith.constant 0 : i32
    %9 = vector.broadcast %c0_i32_3 : i32 to vector<16x256xi32>
    %10 = arith.cmpi slt, %6, %9 : vector<16x256xi32>
    %c0_i32_4 = arith.constant 0 : i32
    %11 = arith.cmpi slt, %4, %c0_i32_4 : i32
    %12 = vector.broadcast %11 : i1 to vector<16x256xi1>
    %13 = vector.broadcast %12 : vector<16x256xi1> to vector<16x256xi1>
    %14 = arith.xori %10, %13 : vector<16x256xi1>
    %15 = arith.andi %14, %8 : vector<16x256xi1>
    %16 = vector.broadcast %4 : i32 to vector<16x256xi32>
    %17 = arith.addi %6, %16 : vector<16x256xi32>
    %18 = arith.select %15, %17, %6 : vector<16x256xi1>, vector<16x256xi32>
    %c1_i32_5 = arith.constant 1 : i32
    %19 = vector.broadcast %c1_i32_5 : i32 to vector<16x256xi32>
    %20 = arith.cmpi sge, %18, %19 : vector<16x256xi32>
    %c14_i32 = arith.constant 14 : i32
    %21 = vector.broadcast %c14_i32 : i32 to vector<16x256xi32>
    %22 = arith.cmpi sle, %18, %21 : vector<16x256xi32>
    %c1_i32_6 = arith.constant 1 : i32
    %23 = tpu.dynamic_rotate %1 by %c1_i32_6 dim 0 : vector<16x256xf32>, i32 -> vector<16x256xf32>
    %cst = arith.constant 0.000000e+00 : f32
    %24 = vector.broadcast %cst : f32 to vector<16x256xf32>
    %25 = arith.select %20, %23, %24 : vector<16x256xi1>, vector<16x256xf32>
    %c15_i32 = arith.constant 15 : i32
    %26 = tpu.dynamic_rotate %1 by %c15_i32 dim 0 : vector<16x256xf32>, i32 -> vector<16x256xf32>
    %cst_7 = arith.constant 0.000000e+00 : f32
    %27 = vector.broadcast %cst_7 : f32 to vector<16x256xf32>
    %28 = arith.select %22, %26, %27 : vector<16x256xi1>, vector<16x256xf32>
    %29 = tpu.concatenate %25, %1, %28 in 1 : vector<16x256xf32>, vector<16x256xf32>, vector<16x256xf32> -> vector<16x768xf32>
    %30 = arith.truncf %29 : vector<16x768xf32> to vector<16x768xbf16>
    %c0_8 = arith.constant 0 : index
    %c0_9 = arith.constant 0 : index
    %31 = vector.load %arg2[%c0_8, %c0_9] : memref<768x256xbf16, #tpu.memory_space<vmem>>, vector<768x256xbf16>
    %cst_10 = arith.constant dense<0.000000e+00> : vector<16x256xf32>
    %32 = tpu.matmul %30, %31, %cst_10 {dimension_numbers = #tpu.dot_dimension_numbers<[1], [0], [0], [1], [0, 0, 1, 1], [], []>} : vector<16x768xbf16>, vector<768x256xbf16>, vector<16x256xf32> -> vector<16x256xf32>
    %c0_11 = arith.constant 0 : index
    %c0_12 = arith.constant 0 : index
    %33 = vector.load %arg3[%c0_11, %c0_12] : memref<1x256xf32, #tpu.memory_space<vmem>>, vector<1x256xf32>
    %34 = vector.broadcast %33 : vector<1x256xf32> to vector<16x256xf32>
    %35 = arith.addf %32, %34 : vector<16x256xf32>
    %cst_13 = arith.constant 2.000000e-01 : f32
    %36 = vector.broadcast %cst_13 : f32 to vector<16x256xf32>
    %37 = arith.mulf %36, %35 : vector<16x256xf32>
    %38 = arith.maximumf %35, %37 : vector<16x256xf32>
    %c1_i32_14 = arith.constant 1 : i32
    %39 = tpu.dynamic_rotate %38 by %c1_i32_14 dim 0 : vector<16x256xf32>, i32 -> vector<16x256xf32>
    %cst_15 = arith.constant 0.000000e+00 : f32
    %40 = vector.broadcast %cst_15 : f32 to vector<16x256xf32>
    %41 = arith.select %20, %39, %40 : vector<16x256xi1>, vector<16x256xf32>
    %c15_i32_16 = arith.constant 15 : i32
    %42 = tpu.dynamic_rotate %38 by %c15_i32_16 dim 0 : vector<16x256xf32>, i32 -> vector<16x256xf32>
    %cst_17 = arith.constant 0.000000e+00 : f32
    %43 = vector.broadcast %cst_17 : f32 to vector<16x256xf32>
    %44 = arith.select %22, %42, %43 : vector<16x256xi1>, vector<16x256xf32>
    %45 = tpu.concatenate %41, %38, %44 in 1 : vector<16x256xf32>, vector<16x256xf32>, vector<16x256xf32> -> vector<16x768xf32>
    %46 = arith.truncf %45 : vector<16x768xf32> to vector<16x768xbf16>
    %c0_18 = arith.constant 0 : index
    %c0_19 = arith.constant 0 : index
    %47 = vector.load %arg4[%c0_18, %c0_19] : memref<768x256xbf16, #tpu.memory_space<vmem>>, vector<768x256xbf16>
    %cst_20 = arith.constant dense<0.000000e+00> : vector<16x256xf32>
    %48 = tpu.matmul %46, %47, %cst_20 {dimension_numbers = #tpu.dot_dimension_numbers<[1], [0], [0], [1], [0, 0, 1, 1], [], []>} : vector<16x768xbf16>, vector<768x256xbf16>, vector<16x256xf32> -> vector<16x256xf32>
    %c0_21 = arith.constant 0 : index
    %c0_22 = arith.constant 0 : index
    %49 = vector.load %arg5[%c0_21, %c0_22] : memref<1x256xf32, #tpu.memory_space<vmem>>, vector<1x256xf32>
    %50 = vector.broadcast %49 : vector<1x256xf32> to vector<16x256xf32>
    %51 = arith.addf %48, %50 : vector<16x256xf32>
    %52 = arith.addf %51, %1 : vector<16x256xf32>
    %53 = vector.shape_cast %52 : vector<16x256xf32> to vector<1x16x256xf32>
    %c0_23 = arith.constant 0 : index
    %c0_24 = arith.constant 0 : index
    %c0_25 = arith.constant 0 : index
    %54 = vector.load %arg6[%c0_23, %c0_24, %c0_25] : memref<1x16x256xf32, #tpu.memory_space<vmem>>, vector<1x16x256xf32>
    tpu.vector_store %arg6[%c0_23, %c0_24, %c0_25], %53 {strides = array<i32>} : memref<1x16x256xf32, #tpu.memory_space<vmem>>, vector<1x16x256xf32>,
    return
  }
  func.func @transform_0(%arg0: i32) -> (i32, i32, i32) {
    %c0_i32 = arith.constant 0 : i32
    %c0_i32_0 = arith.constant 0 : i32
    %c0_i32_1 = arith.constant 0 : i32
    return %arg0, %c0_i32, %c0_i32_0 : i32, i32, i32
  }
  func.func @transform_1(%arg0: i32) -> (i32, i32) {
    %c0_i32 = arith.constant 0 : i32
    %c0_i32_0 = arith.constant 0 : i32
    %c0_i32_1 = arith.constant 0 : i32
    return %c0_i32, %c0_i32_0 : i32, i32
  }
  func.func @transform_2(%arg0: i32) -> (i32, i32) {
    %c0_i32 = arith.constant 0 : i32
    %c0_i32_0 = arith.constant 0 : i32
    %c0_i32_1 = arith.constant 0 : i32
    return %c0_i32, %c0_i32_0 : i32, i32
  }
  func.func @transform_3(%arg0: i32) -> (i32, i32) {
    %c0_i32 = arith.constant 0 : i32
    %c0_i32_0 = arith.constant 0 : i32
    %c0_i32_1 = arith.constant 0 : i32
    return %c0_i32, %c0_i32_0 : i32, i32
  }
  func.func @transform_4(%arg0: i32) -> (i32, i32) {
    %c0_i32 = arith.constant 0 : i32
    %c0_i32_0 = arith.constant 0 : i32
    %c0_i32_1 = arith.constant 0 : i32
    return %c0_i32, %c0_i32_0 : i32, i32
  }
  func.func @transform_5(%arg0: i32) -> (i32, i32, i32) {
    %c0_i32 = arith.constant 0 : i32
    %c0_i32_0 = arith.constant 0 : i32
    %c0_i32_1 = arith.constant 0 : i32
    return %arg0, %c0_i32, %c0_i32_0 : i32, i32, i32
  }
}

</mosaic_0001>

<llo_original>
// kernel: tile.13
$region0: #{tile.13}
  #allocation0 [shape = 's32[1]{0}', space=sflag, size = 0x4, scoped, tag = 'scoped memory for tile.13']
  %s0 = inlined_call_operand.vmem [shape: f32[16], index: 0, kind: input, shape index: {}]
  %s1 = inlined_call_operand.vmem [shape: f32[16,16], index: 1, kind: output, shape index: {}]
  // Predicated region
  $region2: #{tile.13} parent=0 // pred_check
    _
  $region3: #{tile.13} parent=0 // pred_check_branch
    %3 = sbr.rel (0) target = $region5
  $region4: #{tile.13} parent=0 // pred_region
    _
  $region5: #{tile.13} parent=0 // pred_fallthru
    _
  %v4 = vld [vmem:[%s0] ss:$0 sm:$0xff]
  %5 = vst [vmem:[%s1] sm:$0xff] %v4
  %s6 = scalar_lea.vmem %s1, 8
  %7 = vst [vmem:[%s6] sm:$0xff] %v4

// kernel: tile.14
$region0: #{tile.14}
  %s0 = inlined_call_operand.vmem [shape: f32[16,16], index: 0, kind: input, shape index: {}]
  %s1 = inlined_call_operand.vmem [shape: f32[1,256], index: 1, kind: output, shape index: {}]
  $region1: #{tile.14} parent=0
    #allocation0 [shape = 'u8[8192]{0}', space=vmem, size = 0x2000, scoped, tag = 'scoped mem for output reshape']
    %s2 = smov 3
    %v3 = vld [vmem:[%s0] ss:$8 sm:%s2]
    %vm4 = vcmask 130048
    %5 = vst.msk [vmem:[#allocation0] ss:$8 sm:$0x3] %vm4, %v3
    %s6 = scalar_lea.vmem %s0, 7
    %s7 = smov 3
    %v8 = vld [vmem:[%s6] ss:$8 sm:%s7]
    %9 = vrot.lane.b32.xlu0 %v8, 112
    %v10 = vpop.permute.xlu0 %9
    %vm11 = vcmask 1048448
    %12 = vst.msk [vmem:[#allocation0] ss:$8 sm:$0x3] %vm11, %v10
    %s13 = scalar_lea.vmem %s0, 6
    %s14 = smov 3
    %v15 = vld [vmem:[%s13] ss:$8 sm:%s14]
    %16 = vrot.lane.b32.xlu0 %v15, 96
    %v17 = vpop.permute.xlu0 %16
    %vm18 = vcmask 917248
    %19 = vst.msk [vmem:[#allocation0] ss:$8 sm:$0x3] %vm18, %v17
    %s20 = scalar_lea.vmem %s0, 5
    %s21 = smov 3
    %v22 = vld [vmem:[%s20] ss:$8 sm:%s21]
    %23 = vrot.lane.b32.xlu0 %v22, 80
    %v24 = vpop.permute.xlu0 %23
    %vm25 = vcmask 786048
    %26 = vst.msk [vmem:[#allocation0] ss:$8 sm:$0x3] %vm25, %v24
    %s27 = scalar_lea.vmem %s0, 4
    %s28 = smov 3
    %v29 = vld [vmem:[%s27] ss:$8 sm:%s28]
    %30 = vrot.lane.b32.xlu0 %v29, 64
    %v31 = vpop.permute.xlu0 %30
    %vm32 = vcmask 654848
    %33 = vst.msk [vmem:[#allocation0] ss:$8 sm:$0x3] %vm32, %v31
    %s34 = scalar_lea.vmem %s0, 3
    %s35 = smov 3
    %v36 = vld [vmem:[%s34] ss:$8 sm:%s35]
    %37 = vrot.lane.b32.xlu0 %v36, 48
    %v38 = vpop.permute.xlu0 %37
    %vm39 = vcmask 523648
    %40 = vst.msk [vmem:[#allocation0] ss:$8 sm:$0x3] %vm39, %v38
    %s41 = scalar_lea.vmem %s0, 2
    %s42 = smov 3
    %v43 = vld [vmem:[%s41] ss:$8 sm:%s42]
    %44 = vrot.lane.b32.xlu0 %v43, 32
    %v45 = vpop.permute.xlu0 %44
    %vm46 = vcmask 392448
    %47 = vst.msk [vmem:[#allocation0] ss:$8 sm:$0x3] %vm46, %v45
    %s48 = scalar_lea.vmem %s0, 1
    %s49 = smov 3
    %v50 = vld [vmem:[%s48] ss:$8 sm:%s49]
    %51 = vrot.lane.b32.xlu0 %v50, 16
    %v52 = vpop.permute.xlu0 %51
    %vm53 = vcmask 261248
    %54 = vst.msk [vmem:[#allocation0] ss:$8 sm:$0x3] %vm53, %v52
    %s56 = sshll.u32 1, 1
    %s57 = ssub.s32 %s56, 1
    %v59 = vld [vmem:[#allocation0] sm:%s57]
    %s60 = sshll.u32 1, 1
    %s61 = ssub.s32 %s60, 1
    %62 = vst [vmem:[%s1] sm:%s61] %v59
    %s63 = scalar_lea.vmem [#allocation0], 8
    %v64 = vld [vmem:[%s63] sm:%s57]
    %s65 = sshll.u32 1, 1
    %s66 = ssub.s32 %s65, 1
    %s67 = scalar_lea.vmem %s1, 1
    %68 = vst [vmem:[%s67] sm:%s66] %v64

// kernel: resblock_nhwc.1
$region0: #{resblock_nhwc.1}
  #allocation0 [shape = 'u32[]', space=smem, size = 0x4, offset = 0x4, fixed_abs, tag = 'smem constant byte address 0x4 - core index']
  #allocation1 [shape = 'u32[144,128]{1,0:T(1,128)}', space=vmem, size = 0x12000, scoped, tag = 'internal scratch']
  %s0 = inlined_call_operand.vmem [shape: f32[2,16,256], index: 0, kind: input, shape index: {}]
  %s1 = inlined_call_operand.vmem [shape: bf16[768,256], index: 1, kind: input, shape index: {}]
  %s2 = inlined_call_operand.vmem [shape: f32[1,256], index: 2, kind: input, shape index: {}]
  %s3 = inlined_call_operand.vmem [shape: bf16[768,256], index: 3, kind: input, shape index: {}]
  %s4 = inlined_call_operand.vmem [shape: f32[1,256], index: 4, kind: input, shape index: {}]
  %s5 = inlined_call_operand.vmem [shape: f32[2,16,256], index: 5, kind: output, shape index: {}]
  %s6 = sld [smem:[#allocation0]]
  $region53: #{resblock_nhwc.1} parent=0
    _
  %s8 = ssub.s32 1, %s6
  %s9 = scalar_select 0, %s8, %s6
  loop: start=0, step=1, limit=4
  $region2: #{resblock_nhwc.1} parent=0 // loop_pre_header
    _
  $region3: #{resblock_nhwc.1} parent=0 // loop_header
    %s11 = sphi 0, %s15
    %p12 = scmp.ge.s32.totalorder %s11, 4
    %s21 = sphi 0, %s23
    %s24 = sphi 0, %s21
    %s25 = sphi 0, %s24
    %s41 = sphi 0, %s25
    %s45 = sphi 0, %s45
    %s47 = sphi 0, %s45
    %s48 = sphi 0, %s47
    %s62 = sphi 0, %s48
    %s66 = sphi 0, %s66
    %s68 = sphi 0, %s66
    %s69 = sphi 0, %s68
    %s83 = sphi 0, %s69
    %s87 = sphi 0, %s87
    %s89 = sphi 0, %s87
    %s90 = sphi 0, %s89
    %s104 = sphi 0, %s90
    %s108 = sphi 0, %s108
    %s110 = sphi 0, %s108
    %s111 = sphi 0, %s110
    %s125 = sphi 0, %s111
    %s131 = sphi 0, %s133
    %s134 = sphi 0, %s131
    %s135 = sphi 0, %s134
    %s151 = sphi 0, %s135
  $region4: #{resblock_nhwc.1} parent=0 // loop_header_branch
    %14 = sbr.rel (%p12) target = $region8
  $region5: #{resblock_nhwc.1} parent=0 // loop_body
    %s16 = ssub.s32 %s11, 1
    %s17 = ssub.s32 %s11, 2
    %s18 = sadd.s32 %s11, 1
    %s19 = ssub.s32 %s11, %s18
    %p20 = scmp.eq.s32.totalorder %s19, 0
    %s22 = sadd.s32 %s21, 1
    %s23 = scalar_select %p20, %s21, %s22
    %p26 = pneg %p20
    %p27 = scmp.eq.s32.totalorder %s11, 1
    %p28 = por %p26, %p27
    %p29 = scmp.ne.s32.totalorder %s21, %s24
    %p30 = scmp.eq.s32.totalorder %s11, 0
    %p31 = por %p29, %p30
    %p32 = scmp.ne.s32.totalorder %s21, %s24
    %p33 = scmp.eq.s32.totalorder %s16, 1
    %p34 = por %p32, %p33
    %p35 = scmp.ne.s32.totalorder %s24, %s25
    %p36 = scmp.eq.s32.totalorder %s16, 0
    %p37 = por %p35, %p36
    %p38 = scmp.ne.s32.totalorder %s24, %s25
    %p39 = scmp.eq.s32.totalorder %s17, 1
    %p40 = por %p38, %p39
    %p42 = scmp.ne.s32.totalorder %s25, %s41
    %p43 = scmp.eq.s32.totalorder %s17, 0
    %p44 = por %p42, %p43
    %s46 = sadd.s32 %s45, 1
    %p49 = scmp.eq.s32.totalorder %s11, 1
    %p50 = scmp.ne.s32.totalorder %s45, %s47
    %p51 = scmp.eq.s32.totalorder %s11, 0
    %p52 = por %p50, %p51
    %p53 = scmp.ne.s32.totalorder %s45, %s47
    %p54 = scmp.eq.s32.totalorder %s16, 1
    %p55 = por %p53, %p54
    %p56 = scmp.ne.s32.totalorder %s47, %s48
    %p57 = scmp.eq.s32.totalorder %s16, 0
    %p58 = por %p56, %p57
    %p59 = scmp.ne.s32.totalorder %s47, %s48
    %p60 = scmp.eq.s32.totalorder %s17, 1
    %p61 = por %p59, %p60
    %p63 = scmp.ne.s32.totalorder %s48, %s62
    %p64 = scmp.eq.s32.totalorder %s17, 0
    %p65 = por %p63, %p64
    %s67 = sadd.s32 %s66, 1
    %p70 = scmp.eq.s32.totalorder %s11, 1
    %p71 = scmp.ne.s32.totalorder %s66, %s68
    %p72 = scmp.eq.s32.totalorder %s11, 0
    %p73 = por %p71, %p72
    %p74 = scmp.ne.s32.totalorder %s66, %s68
    %p75 = scmp.eq.s32.totalorder %s16, 1
    %p76 = por %p74, %p75
    %p77 = scmp.ne.s32.totalorder %s68, %s69
    %p78 = scmp.eq.s32.totalorder %s16, 0
    %p79 = por %p77, %p78
    %p80 = scmp.ne.s32.totalorder %s68, %s69
    %p81 = scmp.eq.s32.totalorder %s17, 1
    %p82 = por %p80, %p81
    %p84 = scmp.ne.s32.totalorder %s69, %s83
    %p85 = scmp.eq.s32.totalorder %s17, 0
    %p86 = por %p84, %p85
    %s88 = sadd.s32 %s87, 1
    %p91 = scmp.eq.s32.totalorder %s11, 1
    %p92 = scmp.ne.s32.totalorder %s87, %s89
    %p93 = scmp.eq.s32.totalorder %s11, 0
    %p94 = por %p92, %p93
    %p95 = scmp.ne.s32.totalorder %s87, %s89
    %p96 = scmp.eq.s32.totalorder %s16, 1
    %p97 = por %p95, %p96
    %p98 = scmp.ne.s32.totalorder %s89, %s90
    %p99 = scmp.eq.s32.totalorder %s16, 0
    %p100 = por %p98, %p99
    %p101 = scmp.ne.s32.totalorder %s89, %s90
    %p102 = scmp.eq.s32.totalorder %s17, 1
    %p103 = por %p101, %p102
    %p105 = scmp.ne.s32.totalorder %s90, %s104
    %p106 = scmp.eq.s32.totalorder %s17, 0
    %p107 = por %p105, %p106
    %s109 = sadd.s32 %s108, 1
    %p112 = scmp.eq.s32.totalorder %s11, 1
    %p113 = scmp.ne.s32.totalorder %s108, %s110
    %p114 = scmp.eq.s32.totalorder %s11, 0
    %p115 = por %p113, %p114
    %p116 = scmp.ne.s32.totalorder %s108, %s110
    %p117 = scmp.eq.s32.totalorder %s16, 1
    %p118 = por %p116, %p117
    %p119 = scmp.ne.s32.totalorder %s110, %s111
    %p120 = scmp.eq.s32.totalorder %s16, 0
    %p121 = por %p119, %p120
    %p122 = scmp.ne.s32.totalorder %s110, %s111
    %p123 = scmp.eq.s32.totalorder %s17, 1
    %p124 = por %p122, %p123
    %p126 = scmp.ne.s32.totalorder %s111, %s125
    %p127 = scmp.eq.s32.totalorder %s17, 0
    %p128 = por %p126, %p127
    %s129 = ssub.s32 %s11, %s18
    %p130 = scmp.eq.s32.totalorder %s129, 0
    %s132 = sadd.s32 %s131, 1
    %s133 = scalar_select %p130, %s131, %s132
    %p136 = pneg %p130
    %p137 = scmp.eq.s32.totalorder %s11, 1
    %p138 = por %p136, %p137
    %p139 = scmp.ne.s32.totalorder %s131, %s134
    %p140 = scmp.eq.s32.totalorder %s11, 0
    %p141 = por %p139, %p140
    %p142 = scmp.ne.s32.totalorder %s131, %s134
    %p143 = scmp.eq.s32.totalorder %s16, 1
    %p144 = por %p142, %p143
    %p145 = scmp.ne.s32.totalorder %s134, %s135
    %p146 = scmp.eq.s32.totalorder %s16, 0
    %p147 = por %p145, %p146
    %p148 = scmp.ne.s32.totalorder %s134, %s135
    %p149 = scmp.eq.s32.totalorder %s17, 1
    %p150 = por %p148, %p149
    %p152 = scmp.ne.s32.totalorder %s135, %s151
    %p153 = scmp.eq.s32.totalorder %s17, 0
    %p154 = por %p152, %p153
    %p155 = scmp.le.s32.totalorder 1, %s11
    %p156 = scmp.lt.s32.totalorder %s11, 3
    %p157 = pnand %p155, %p156
    %p158 = pneg %p157
    // Predicated region
    $region9: #{resblock_nhwc.1} parent=5 // pred_check
      _
    $region10: #{resblock_nhwc.1} parent=5 // pred_check_branch
      %160 = sbr.rel (%p157) target = $region12
    $region11: #{resblock_nhwc.1} parent=5 // pred_region
      %s161 = ssub.s32 %s11, 1
      // Predicated region
      $region13: #{resblock_nhwc.1} parent=11 // pred_check
        %p162 = pneg %p58
      $region14: #{resblock_nhwc.1} parent=11 // pred_check_branch
        %164 = sbr.rel (%p162) target = $region16
      $region15: #{resblock_nhwc.1} parent=11 // pred_region
        _
      $region16: #{resblock_nhwc.1} parent=11 // pred_fallthru
        _
      // Predicated region
      $region17: #{resblock_nhwc.1} parent=11 // pred_check
        %p165 = pneg %p79
      $region18: #{resblock_nhwc.1} parent=11 // pred_check_branch
        %167 = sbr.rel (%p165) target = $region20
      $region19: #{resblock_nhwc.1} parent=11 // pred_region
        _
      $region20: #{resblock_nhwc.1} parent=11 // pred_fallthru
        _
      // Predicated region
      $region21: #{resblock_nhwc.1} parent=11 // pred_check
        %p168 = pneg %p100
      $region22: #{resblock_nhwc.1} parent=11 // pred_check_branch
        %170 = sbr.rel (%p168) target = $region24
      $region23: #{resblock_nhwc.1} parent=11 // pred_region
        _
      $region24: #{resblock_nhwc.1} parent=11 // pred_fallthru
        _
      // Predicated region
      $region25: #{resblock_nhwc.1} parent=11 // pred_check
        %p171 = pneg %p121
      $region26: #{resblock_nhwc.1} parent=11 // pred_check_branch
        %173 = sbr.rel (%p171) target = $region28
      $region27: #{resblock_nhwc.1} parent=11 // pred_region
        _
      $region28: #{resblock_nhwc.1} parent=11 // pred_fallthru
        _
    $region12: #{resblock_nhwc.1} parent=5 // pred_fallthru
      _
    %p174 = scmp.lt.s32.totalorder %s11, 2
    // Predicated region
    $region29: #{resblock_nhwc.1} parent=5 // pred_check
      %p175 = pneg %p174
    $region30: #{resblock_nhwc.1} parent=5 // pred_check_branch
      %177 = sbr.rel (%p175) target = $region32
    $region31: #{resblock_nhwc.1} parent=5 // pred_region
      // Predicated region
      $region33: #{resblock_nhwc.1} parent=31 // pred_check
        %p178 = pneg %p31
      $region34: #{resblock_nhwc.1} parent=31 // pred_check_branch
        %180 = sbr.rel (%p178) target = $region36
      $region35: #{resblock_nhwc.1} parent=31 // pred_region
        %p181 = scmp.lt.s32.totalorder %s11, 1
        %s182 = scalar_select %p181, %s11, 1
        %s183 = smul.addr %s182, 4
        %s184 = smul.addr %s183, 8
        %s185 = scalar_lea.vmem %s0, %s184
      $region36: #{resblock_nhwc.1} parent=31 // pred_fallthru
        _
    $region32: #{resblock_nhwc.1} parent=5 // pred_fallthru
      _
    %p186 = scmp.le.s32.totalorder 1, %s11
    %p187 = scmp.lt.s32.totalorder %s11, 3
    %p188 = pnand %p186, %p187
    %p189 = pneg %p188
    // Predicated region
    $region37: #{resblock_nhwc.1} parent=5 // pred_check
      _
    $region38: #{resblock_nhwc.1} parent=5 // pred_check_branch
      %191 = sbr.rel (%p188) target = $region40
    $region39: #{resblock_nhwc.1} parent=5 // pred_region
      %s192 = ssub.s32 %s11, 1
      %p193 = scmp.lt.s32.totalorder %s16, 1
      %s194 = scalar_select %p193, %s16, 1
      %s195 = smul.addr %s194, 4
      %s196 = smul.addr %s195, 8
      %s197 = scalar_lea.vmem %s0, %s196
      %p198 = pneg %p37
      %p199 = pneg %p34
      %p200 = pneg %p58
      %p201 = pneg %p55
      %p202 = pneg %p79
      %p203 = pneg %p76
      %p204 = pneg %p100
      %p205 = pneg %p97
      %p206 = pneg %p121
      %p207 = pneg %p118
      %p208 = pneg %p147
      %p209 = pneg %p144
      %p210 = scmp.lt.s32.totalorder %s16, 1
      %s211 = scalar_select %p210, %s16, 1
      %s212 = smul.addr %s211, 4
      %s213 = smul.addr %s212, 8
      %s214 = scalar_lea.vmem %s5, %s213
      %p215 = scmp.lt.s32.totalorder %s16, 1
      %s216 = scalar_select %p215, %s16, 1
      %s217 = smul.addr %s216, 4
      %s218 = smul.addr %s217, 8
      %s219 = scalar_lea.vmem %s0, %s218
      %p220 = scmp.lt.s32.totalorder %s16, 1
      %s221 = scalar_select %p220, %s16, 1
      %s222 = smul.addr %s221, 4
      %s223 = smul.addr %s222, 8
      %s224 = scalar_lea.vmem %s5, %s223
      %v225 = vld [vmem:[%s219] sm:$0xff]
      %v226 = vld [vmem:[%s219 + $0x8] sm:$0xff]
      %v227 = vld [vmem:[%s219 + $0x10] sm:$0xff]
      %v228 = vld [vmem:[%s219 + $0x18] sm:$0xff]
      %v229 = vlaneseq
      %v230 = vshrl.u32 %v229, 7
      %v231 = vadd.s32 %v230, 8
      %vm232 = vcmp.lt.s32.totalorder %v230, 0
      %v233 = vsub.s32 0, %v230
      %v234 = vsel %vm232, %v233, %v230
      %v235 = vshrl.u32 %v234, 4
      %v236 = vand.u32 %v234, 15
      %v237 = vsub.s32 0, %v236
      %v238 = vsel %vm232, %v237, %v236
      %vm239 = vcmp.lt.s32.totalorder %v231, 0
      %v240 = vsub.s32 0, %v231
      %v241 = vsel %vm239, %v240, %v231
      %v242 = vshrl.u32 %v241, 4
      %v243 = vand.u32 %v241, 15
      %v244 = vsub.s32 0, %v243
      %v245 = vsel %vm239, %v244, %v243
      %vm246 = vcmp.ne.s32.totalorder %v238, 0
      %vm247 = vcmp.ne.s32.totalorder %v245, 0
      %vm248 = vcmp.lt.s32.totalorder %v238, 0
      %vm249 = vcmp.lt.s32.totalorder %v245, 0
      %vm250 = vmand %vm248, %vm246
      %vm251 = vmand %vm249, %vm247
      %v252 = vadd.s32 %v238, 16
      %v253 = vadd.s32 %v245, 16
      %v254 = vsel %vm250, %v252, %v238
      %v255 = vsel %vm251, %v253, %v245
      %vm256 = vcmp.ge.s32.totalorder %v254, 1
      %vm257 = vcmp.ge.s32.totalorder %v255, 1
      %vm258 = vcmp.le.s32.totalorder %v254, 14
      %vm259 = vcmp.le.s32.totalorder %v255, 14
      %v260 = vrot.slane %v225, 7
      %v261 = vrot.slane %v226, 7
      %v262 = vrot.slane %v227, 7
      %v263 = vrot.slane %v228, 7
      %vm264 = vcmp.lt.s32.totalorder %v230, 1
      %v265 = vsel %vm264, %v260, %v262
      %v266 = vsel %vm264, %v261, %v263
      %v267 = vsel %vm264, %v262, %v260
      %v268 = vsel %vm264, %v263, %v261
      %v269 = vsel %vm256, %v267, 0.0
      %v270 = vsel %vm256, %v268, 0.0
      %v271 = vsel %vm257, %v265, 0.0
      %v272 = vsel %vm257, %v266, 0.0
      %v273 = vrot.slane %v225, 1
      %v274 = vrot.slane %v226, 1
      %v275 = vrot.slane %v227, 1
      %v276 = vrot.slane %v228, 1
      %vm277 = vcmp.lt.s32.totalorder %v230, 7
      %v278 = vsel %vm277, %v273, %v275
      %v279 = vsel %vm277, %v274, %v276
      %v280 = vsel %vm277, %v275, %v273
      %v281 = vsel %vm277, %v276, %v274
      %v282 = vsel %vm258, %v278, 0.0
      %v283 = vsel %vm258, %v279, 0.0
      %v284 = vsel %vm259, %v280, 0.0
      %v285 = vsel %vm259, %v281, 0.0
      %v286 = vpack.c.bf16 %v271, %v269
      %v287 = vpack.c.bf16 %v272, %v270
      %v288 = vpack.c.bf16 %v227, %v225
      %v289 = vpack.c.bf16 %v228, %v226
      %v290 = vpack.c.bf16 %v284, %v282
      %v291 = vpack.c.bf16 %v285, %v283
      %v292 = vld [vmem:[%s1] sm:$0xff]
      %v293 = vld [vmem:[%s1 + $0x8] sm:$0xff]
      %v294 = vld [vmem:[%s1 + $0x10] sm:$0xff]
      %v295 = vld [vmem:[%s1 + $0x18] sm:$0xff]
      %v296 = vld [vmem:[%s1 + $0x20] sm:$0xff]
      %v297 = vld [vmem:[%s1 + $0x28] sm:$0xff]
      %v298 = vld [vmem:[%s1 + $0x30] sm:$0xff]
      %v299 = vld [vmem:[%s1 + $0x38] sm:$0xff]
      %v300 = vld [vmem:[%s1 + $0x40] sm:$0xff]
      %v301 = vld [vmem:[%s1 + $0x48] sm:$0xff]
      %v302 = vld [vmem:[%s1 + $0x50] sm:$0xff]
      %v303 = vld [vmem:[%s1 + $0x58] sm:$0xff]
      %v304 = vld [vmem:[%s1 + $0x60] sm:$0xff]
      %v305 = vld [vmem:[%s1 + $0x68] sm:$0xff]
      %v306 = vld [vmem:[%s1 + $0x70] sm:$0xff]
      %v307 = vld [vmem:[%s1 + $0x78] sm:$0xff]
      %v308 = vld [vmem:[%s1 + $0x80] sm:$0xff]
      %v309 = vld [vmem:[%s1 + $0x88] sm:$0xff]
      %v310 = vld [vmem:[%s1 + $0x90] sm:$0xff]
      %v311 = vld [vmem:[%s1 + $0x98] sm:$0xff]
      %v312 = vld [vmem:[%s1 + $0xa0] sm:$0xff]
      %v313 = vld [vmem:[%s1 + $0xa8] sm:$0xff]
      %v314 = vld [vmem:[%s1 + $0xb0] sm:$0xff]
      %v315 = vld [vmem:[%s1 + $0xb8] sm:$0xff]
      %v316 = vld [vmem:[%s1 + $0xc0] sm:$0xff]
      %v317 = vld [vmem:[%s1 + $0xc8] sm:$0xff]
      %v318 = vld [vmem:[%s1 + $0xd0] sm:$0xff]
      %v319 = vld [vmem:[%s1 + $0xd8] sm:$0xff]
      %v320 = vld [vmem:[%s1 + $0xe0] sm:$0xff]
      %v321 = vld [vmem:[%s1 + $0xe8] sm:$0xff]
      %v322 = vld [vmem:[%s1 + $0xf0] sm:$0xff]
      %v323 = vld [vmem:[%s1 + $0xf8] sm:$0xff]
      %v324 = vld [vmem:[%s1 + $0x100] sm:$0xff]
      %v325 = vld [vmem:[%s1 + $0x108] sm:$0xff]
      %v326 = vld [vmem:[%s1 + $0x110] sm:$0xff]
      %v327 = vld [vmem:[%s1 + $0x118] sm:$0xff]
      %v328 = vld [vmem:[%s1 + $0x120] sm:$0xff]
      %v329 = vld [vmem:[%s1 + $0x128] sm:$0xff]
      %v330 = vld [vmem:[%s1 + $0x130] sm:$0xff]
      %v331 = vld [vmem:[%s1 + $0x138] sm:$0xff]
      %v332 = vld [vmem:[%s1 + $0x140] sm:$0xff]
      %v333 = vld [vmem:[%s1 + $0x148] sm:$0xff]
      %v334 = vld [vmem:[%s1 + $0x150] sm:$0xff]
      %v335 = vld [vmem:[%s1 + $0x158] sm:$0xff]
      %v336 = vld [vmem:[%s1 + $0x160] sm:$0xff]
      %v337 = vld [vmem:[%s1 + $0x168] sm:$0xff]
      %v338 = vld [vmem:[%s1 + $0x170] sm:$0xff]
      %v339 = vld [vmem:[%s1 + $0x178] sm:$0xff]
      %v340 = vld [vmem:[%s1 + $0x180] sm:$0xff]
      %v341 = vld [vmem:[%s1 + $0x188] sm:$0xff]
      %v342 = vld [vmem:[%s1 + $0x190] sm:$0xff]
      %v343 = vld [vmem:[%s1 + $0x198] sm:$0xff]
      %v344 = vld [vmem:[%s1 + $0x1a0] sm:$0xff]
      %v345 = vld [vmem:[%s1 + $0x1a8] sm:$0xff]
      %v346 = vld [vmem:[%s1 + $0x1b0] sm:$0xff]
      %v347 = vld [vmem:[%s1 + $0x1b8] sm:$0xff]
      %v348 = vld [vmem:[%s1 + $0x1c0] sm:$0xff]
      %v349 = vld [vmem:[%s1 + $0x1c8] sm:$0xff]
      %v350 = vld [vmem:[%s1 + $0x1d0] sm:$0xff]
      %v351 = vld [vmem:[%s1 + $0x1d8] sm:$0xff]
      %v352 = vld [vmem:[%s1 + $0x1e0] sm:$0xff]
      %v353 = vld [vmem:[%s1 + $0x1e8] sm:$0xff]
      %v354 = vld [vmem:[%s1 + $0x1f0] sm:$0xff]
      %v355 = vld [vmem:[%s1 + $0x1f8] sm:$0xff]
      %v356 = vld [vmem:[%s1 + $0x200] sm:$0xff]
      %v357 = vld [vmem:[%s1 + $0x208] sm:$0xff]
      %v358 = vld [vmem:[%s1 + $0x210] sm:$0xff]
      %v359 = vld [vmem:[%s1 + $0x218] sm:$0xff]
      %v360 = vld [vmem:[%s1 + $0x220] sm:$0xff]
      %v361 = vld [vmem:[%s1 + $0x228] sm:$0xff]
      %v362 = vld [vmem:[%s1 + $0x230] sm:$0xff]
      %v363 = vld [vmem:[%s1 + $0x238] sm:$0xff]
      %v364 = vld [vmem:[%s1 + $0x240] sm:$0xff]
      %v365 = vld [vmem:[%s1 + $0x248] sm:$0xff]
      %v366 = vld [vmem:[%s1 + $0x250] sm:$0xff]
      %v367 = vld [vmem:[%s1 + $0x258] sm:$0xff]
      %v368 = vld [vmem:[%s1 + $0x260] sm:$0xff]
      %v369 = vld [vmem:[%s1 + $0x268] sm:$0xff]
      %v370 = vld [vmem:[%s1 + $0x270] sm:$0xff]
      %v371 = vld [vmem:[%s1 + $0x278] sm:$0xff]
      %v372 = vld [vmem:[%s1 + $0x280] sm:$0xff]
      %v373 = vld [vmem:[%s1 + $0x288] sm:$0xff]
      %v374 = vld [vmem:[%s1 + $0x290] sm:$0xff]
      %v375 = vld [vmem:[%s1 + $0x298] sm:$0xff]
      %v376 = vld [vmem:[%s1 + $0x2a0] sm:$0xff]
      %v377 = vld [vmem:[%s1 + $0x2a8] sm:$0xff]
      %v378 = vld [vmem:[%s1 + $0x2b0] sm:$0xff]
      %v379 = vld [vmem:[%s1 + $0x2b8] sm:$0xff]
      %v380 = vld [vmem:[%s1 + $0x2c0] sm:$0xff]
      %v381 = vld [vmem:[%s1 + $0x2c8] sm:$0xff]
      %v382 = vld [vmem:[%s1 + $0x2d0] sm:$0xff]
      %v383 = vld [vmem:[%s1 + $0x2d8] sm:$0xff]
      %v384 = vld [vmem:[%s1 + $0x2e0] sm:$0xff]
      %v385 = vld [vmem:[%s1 + $0x2e8] sm:$0xff]
      %v386 = vld [vmem:[%s1 + $0x2f0] sm:$0xff]
      %v387 = vld [vmem:[%s1 + $0x2f8] sm:$0xff]
      %v388 = vld [vmem:[%s2] sm:$0x3]
      %v390 = vlaneseq
      %v391 = vshrl.u32 %v390, 7
      %v392 = vsub.s32 0, %v391
      %v393 = vrot.slane %v388, %v392
      %v394 = vlaneseq
      %v395 = vshrl.u32 %v394, 7
      %v396 = vsub.s32 1, %v395
      %v397 = vrot.slane %v388, %v396
      %v496 = vunpack.c.l.b16 %v292
      %v497 = vunpack.c.h.b16 %v292
      %v498 = vunpack.c.l.b16 %v293
      %v499 = vunpack.c.h.b16 %v293
      %v500 = vunpack.c.l.b16 %v294
      %v501 = vunpack.c.h.b16 %v294
      %v502 = vunpack.c.l.b16 %v295
      %v503 = vunpack.c.h.b16 %v295
      %v504 = vunpack.c.l.b16 %v296
      %v505 = vunpack.c.h.b16 %v296
      %v506 = vunpack.c.l.b16 %v297
      %v507 = vunpack.c.h.b16 %v297
      %v508 = vunpack.c.l.b16 %v298
      %v509 = vunpack.c.h.b16 %v298
      %v510 = vunpack.c.l.b16 %v299
      %v511 = vunpack.c.h.b16 %v299
      %v512 = vunpack.c.l.b16 %v300
      %v513 = vunpack.c.h.b16 %v300
      %v514 = vunpack.c.l.b16 %v301
      %v515 = vunpack.c.h.b16 %v301
      %v516 = vunpack.c.l.b16 %v302
      %v517 = vunpack.c.h.b16 %v302
      %v518 = vunpack.c.l.b16 %v303
      %v519 = vunpack.c.h.b16 %v303
      %v520 = vunpack.c.l.b16 %v304
      %v521 = vunpack.c.h.b16 %v304
      %v522 = vunpack.c.l.b16 %v305
      %v523 = vunpack.c.h.b16 %v305
      %v524 = vunpack.c.l.b16 %v306
      %v525 = vunpack.c.h.b16 %v306
      %v526 = vunpack.c.l.b16 %v307
      %v527 = vunpack.c.h.b16 %v307
      %v528 = vunpack.c.l.b16 %v308
      %v529 = vunpack.c.h.b16 %v308
      %v530 = vunpack.c.l.b16 %v309
      %v531 = vunpack.c.h.b16 %v309
      %v532 = vunpack.c.l.b16 %v310
      %v533 = vunpack.c.h.b16 %v310
      %v534 = vunpack.c.l.b16 %v311
      %v535 = vunpack.c.h.b16 %v311
      %v536 = vunpack.c.l.b16 %v312
      %v537 = vunpack.c.h.b16 %v312
      %v538 = vunpack.c.l.b16 %v313
      %v539 = vunpack.c.h.b16 %v313
      %v540 = vunpack.c.l.b16 %v314
      %v541 = vunpack.c.h.b16 %v314
      %v542 = vunpack.c.l.b16 %v315
      %v543 = vunpack.c.h.b16 %v315
      %v544 = vunpack.c.l.b16 %v316
      %v545 = vunpack.c.h.b16 %v316
      %v546 = vunpack.c.l.b16 %v317
      %v547 = vunpack.c.h.b16 %v317
      %v548 = vunpack.c.l.b16 %v318
      %v549 = vunpack.c.h.b16 %v318
      %v550 = vunpack.c.l.b16 %v319
      %v551 = vunpack.c.h.b16 %v319
      %v552 = vunpack.c.l.b16 %v320
      %v553 = vunpack.c.h.b16 %v320
      %v554 = vunpack.c.l.b16 %v321
      %v555 = vunpack.c.h.b16 %v321
      %v556 = vunpack.c.l.b16 %v322
      %v557 = vunpack.c.h.b16 %v322
      %v558 = vunpack.c.l.b16 %v323
      %v559 = vunpack.c.h.b16 %v323
      %v560 = vunpack.c.l.b16 %v324
      %v561 = vunpack.c.h.b16 %v324
      %v562 = vunpack.c.l.b16 %v325
      %v563 = vunpack.c.h.b16 %v325
      %v564 = vunpack.c.l.b16 %v326
      %v565 = vunpack.c.h.b16 %v326
      %v566 = vunpack.c.l.b16 %v327
      %v567 = vunpack.c.h.b16 %v327
      %v568 = vunpack.c.l.b16 %v328
      %v569 = vunpack.c.h.b16 %v328
      %v570 = vunpack.c.l.b16 %v329
      %v571 = vunpack.c.h.b16 %v329
      %v572 = vunpack.c.l.b16 %v330
      %v573 = vunpack.c.h.b16 %v330
      %v574 = vunpack.c.l.b16 %v331
      %v575 = vunpack.c.h.b16 %v331
      %v576 = vunpack.c.l.b16 %v332
      %v577 = vunpack.c.h.b16 %v332
      %v578 = vunpack.c.l.b16 %v333
      %v579 = vunpack.c.h.b16 %v333
      %v580 = vunpack.c.l.b16 %v334
      %v581 = vunpack.c.h.b16 %v334
      %v582 = vunpack.c.l.b16 %v335
      %v583 = vunpack.c.h.b16 %v335
      %v584 = vunpack.c.l.b16 %v336
      %v585 = vunpack.c.h.b16 %v336
      %v586 = vunpack.c.l.b16 %v337
      %v587 = vunpack.c.h.b16 %v337
      %v588 = vunpack.c.l.b16 %v338
      %v589 = vunpack.c.h.b16 %v338
      %v590 = vunpack.c.l.b16 %v339
      %v591 = vunpack.c.h.b16 %v339
      %v592 = vunpack.c.l.b16 %v340
      %v593 = vunpack.c.h.b16 %v340
      %v594 = vunpack.c.l.b16 %v341
      %v595 = vunpack.c.h.b16 %v341
      %v596 = vunpack.c.l.b16 %v342
      %v597 = vunpack.c.h.b16 %v342
      %v598 = vunpack.c.l.b16 %v343
      %v599 = vunpack.c.h.b16 %v343
      %v600 = vunpack.c.l.b16 %v344
      %v601 = vunpack.c.h.b16 %v344
      %v602 = vunpack.c.l.b16 %v345
      %v603 = vunpack.c.h.b16 %v345
      %v604 = vunpack.c.l.b16 %v346
      %v605 = vunpack.c.h.b16 %v346
      %v606 = vunpack.c.l.b16 %v347
      %v607 = vunpack.c.h.b16 %v347
      %v608 = vunpack.c.l.b16 %v348
      %v609 = vunpack.c.h.b16 %v348
      %v610 = vunpack.c.l.b16 %v349
      %v611 = vunpack.c.h.b16 %v349
      %v612 = vunpack.c.l.b16 %v350
      %v613 = vunpack.c.h.b16 %v350
      %v614 = vunpack.c.l.b16 %v351
      %v615 = vunpack.c.h.b16 %v351
      %v616 = vunpack.c.l.b16 %v352
      %v617 = vunpack.c.h.b16 %v352
      %v618 = vunpack.c.l.b16 %v353
      %v619 = vunpack.c.h.b16 %v353
      %v620 = vunpack.c.l.b16 %v354
      %v621 = vunpack.c.h.b16 %v354
      %v622 = vunpack.c.l.b16 %v355
      %v623 = vunpack.c.h.b16 %v355
      %v624 = vunpack.c.l.b16 %v356
      %v625 = vunpack.c.h.b16 %v356
      %v626 = vunpack.c.l.b16 %v357
      %v627 = vunpack.c.h.b16 %v357
      %v628 = vunpack.c.l.b16 %v358
      %v629 = vunpack.c.h.b16 %v358
      %v630 = vunpack.c.l.b16 %v359
      %v631 = vunpack.c.h.b16 %v359
      %v632 = vunpack.c.l.b16 %v360
      %v633 = vunpack.c.h.b16 %v360
      %v634 = vunpack.c.l.b16 %v361
      %v635 = vunpack.c.h.b16 %v361
      %v636 = vunpack.c.l.b16 %v362
      %v637 = vunpack.c.h.b16 %v362
      %v638 = vunpack.c.l.b16 %v363
      %v639 = vunpack.c.h.b16 %v363
      %v640 = vunpack.c.l.b16 %v364
      %v641 = vunpack.c.h.b16 %v364
      %v642 = vunpack.c.l.b16 %v365
      %v643 = vunpack.c.h.b16 %v365
      %v644 = vunpack.c.l.b16 %v366
      %v645 = vunpack.c.h.b16 %v366
      %v646 = vunpack.c.l.b16 %v367
      %v647 = vunpack.c.h.b16 %v367
      %v648 = vunpack.c.l.b16 %v368
      %v649 = vunpack.c.h.b16 %v368
      %v650 = vunpack.c.l.b16 %v369
      %v651 = vunpack.c.h.b16 %v369
      %v652 = vunpack.c.l.b16 %v370
      %v653 = vunpack.c.h.b16 %v370
      %v654 = vunpack.c.l.b16 %v371
      %v655 = vunpack.c.h.b16 %v371
      %v656 = vunpack.c.l.b16 %v372
      %v657 = vunpack.c.h.b16 %v372
      %v658 = vunpack.c.l.b16 %v373
      %v659 = vunpack.c.h.b16 %v373
      %v660 = vunpack.c.l.b16 %v374
      %v661 = vunpack.c.h.b16 %v374
      %v662 = vunpack.c.l.b16 %v375
      %v663 = vunpack.c.h.b16 %v375
      %v664 = vunpack.c.l.b16 %v376
      %v665 = vunpack.c.h.b16 %v376
      %v666 = vunpack.c.l.b16 %v377
      %v667 = vunpack.c.h.b16 %v377
      %v668 = vunpack.c.l.b16 %v378
      %v669 = vunpack.c.h.b16 %v378
      %v670 = vunpack.c.l.b16 %v379
      %v671 = vunpack.c.h.b16 %v379
      %v672 = vunpack.c.l.b16 %v380
      %v673 = vunpack.c.h.b16 %v380
      %v674 = vunpack.c.l.b16 %v381
      %v675 = vunpack.c.h.b16 %v381
      %v676 = vunpack.c.l.b16 %v382
      %v677 = vunpack.c.h.b16 %v382
      %v678 = vunpack.c.l.b16 %v383
      %v679 = vunpack.c.h.b16 %v383
      %v680 = vunpack.c.l.b16 %v384
      %v681 = vunpack.c.h.b16 %v384
      %v682 = vunpack.c.l.b16 %v385
      %v683 = vunpack.c.h.b16 %v385
      %v684 = vunpack.c.l.b16 %v386
      %v685 = vunpack.c.h.b16 %v386
      %v686 = vunpack.c.l.b16 %v387
      %v687 = vunpack.c.h.b16 %v387
      %v688 = vpack.c.b16 %v498, %v496
      %v689 = vpack.c.b16 %v499, %v497
      %v690 = vpack.c.b16 %v502, %v500
      %v691 = vpack.c.b16 %v503, %v501
      %v692 = vpack.c.b16 %v506, %v504
      %v693 = vpack.c.b16 %v507, %v505
      %v694 = vpack.c.b16 %v510, %v508
      %v695 = vpack.c.b16 %v511, %v509
      %v696 = vpack.c.b16 %v514, %v512
      %v697 = vpack.c.b16 %v515, %v513
      %v698 = vpack.c.b16 %v518, %v516
      %v699 = vpack.c.b16 %v519, %v517
      %v700 = vpack.c.b16 %v522, %v520
      %v701 = vpack.c.b16 %v523, %v521
      %v702 = vpack.c.b16 %v526, %v524
      %v703 = vpack.c.b16 %v527, %v525
      %v704 = vpack.c.b16 %v530, %v528
      %v705 = vpack.c.b16 %v531, %v529
      %v706 = vpack.c.b16 %v534, %v532
      %v707 = vpack.c.b16 %v535, %v533
      %v708 = vpack.c.b16 %v538, %v536
      %v709 = vpack.c.b16 %v539, %v537
      %v710 = vpack.c.b16 %v542, %v540
      %v711 = vpack.c.b16 %v543, %v541
      %v712 = vpack.c.b16 %v546, %v544
      %v713 = vpack.c.b16 %v547, %v545
      %v714 = vpack.c.b16 %v550, %v548
      %v715 = vpack.c.b16 %v551, %v549
      %v716 = vpack.c.b16 %v554, %v552
      %v717 = vpack.c.b16 %v555, %v553
      %v718 = vpack.c.b16 %v558, %v556
      %v719 = vpack.c.b16 %v559, %v557
      %v720 = vpack.c.b16 %v562, %v560
      %v721 = vpack.c.b16 %v563, %v561
      %v722 = vpack.c.b16 %v566, %v564
      %v723 = vpack.c.b16 %v567, %v565
      %v724 = vpack.c.b16 %v570, %v568
      %v725 = vpack.c.b16 %v571, %v569
      %v726 = vpack.c.b16 %v574, %v572
      %v727 = vpack.c.b16 %v575, %v573
      %v728 = vpack.c.b16 %v578, %v576
      %v729 = vpack.c.b16 %v579, %v577
      %v730 = vpack.c.b16 %v582, %v580
      %v731 = vpack.c.b16 %v583, %v581
      %v732 = vpack.c.b16 %v586, %v584
      %v733 = vpack.c.b16 %v587, %v585
      %v734 = vpack.c.b16 %v590, %v588
      %v735 = vpack.c.b16 %v591, %v589
      %v736 = vpack.c.b16 %v594, %v592
      %v737 = vpack.c.b16 %v595, %v593
      %v738 = vpack.c.b16 %v598, %v596
      %v739 = vpack.c.b16 %v599, %v597
      %v740 = vpack.c.b16 %v602, %v600
      %v741 = vpack.c.b16 %v603, %v601
      %v742 = vpack.c.b16 %v606, %v604
      %v743 = vpack.c.b16 %v607, %v605
      %v744 = vpack.c.b16 %v610, %v608
      %v745 = vpack.c.b16 %v611, %v609
      %v746 = vpack.c.b16 %v614, %v612
      %v747 = vpack.c.b16 %v615, %v613
      %v748 = vpack.c.b16 %v618, %v616
      %v749 = vpack.c.b16 %v619, %v617
      %v750 = vpack.c.b16 %v622, %v620
      %v751 = vpack.c.b16 %v623, %v621
      %v752 = vpack.c.b16 %v626, %v624
      %v753 = vpack.c.b16 %v627, %v625
      %v754 = vpack.c.b16 %v630, %v628
      %v755 = vpack.c.b16 %v631, %v629
      %v756 = vpack.c.b16 %v634, %v632
      %v757 = vpack.c.b16 %v635, %v633
      %v758 = vpack.c.b16 %v638, %v636
      %v759 = vpack.c.b16 %v639, %v637
      %v760 = vpack.c.b16 %v642, %v640
      %v761 = vpack.c.b16 %v643, %v641
      %v762 = vpack.c.b16 %v646, %v644
      %v763 = vpack.c.b16 %v647, %v645
      %v764 = vpack.c.b16 %v650, %v648
      %v765 = vpack.c.b16 %v651, %v649
      %v766 = vpack.c.b16 %v654, %v652
      %v767 = vpack.c.b16 %v655, %v653
      %v768 = vpack.c.b16 %v658, %v656
      %v769 = vpack.c.b16 %v659, %v657
      %v770 = vpack.c.b16 %v662, %v660
      %v771 = vpack.c.b16 %v663, %v661
      %v772 = vpack.c.b16 %v666, %v664
      %v773 = vpack.c.b16 %v667, %v665
      %v774 = vpack.c.b16 %v670, %v668
      %v775 = vpack.c.b16 %v671, %v669
      %v776 = vpack.c.b16 %v674, %v672
      %v777 = vpack.c.b16 %v675, %v673
      %v778 = vpack.c.b16 %v678, %v676
      %v779 = vpack.c.b16 %v679, %v677
      %v780 = vpack.c.b16 %v682, %v680
      %v781 = vpack.c.b16 %v683, %v681
      %v782 = vpack.c.b16 %v686, %v684
      %v783 = vpack.c.b16 %v687, %v685
      %880 = vmatprep.subr.bf16.mxu0 %v703
      %881 = vmatpush1.bf16.msra.mxu0 %v702
      %882 = vmatprep.subr.bf16.mxu0 %v701
      %883 = vmatpush1.bf16.msra.mxu0 %v700
      %884 = vmatprep.subr.bf16.mxu0 %v699
      %885 = vmatpush1.bf16.msra.mxu0 %v698
      %886 = vmatprep.subr.bf16.mxu0 %v697
      %887 = vmatpush1.bf16.msra.mxu0 %v696
      %888 = vmatprep.subr.bf16.mxu0 %v695
      %889 = vmatpush1.bf16.msra.mxu0 %v694
      %890 = vmatprep.subr.bf16.mxu0 %v693
      %891 = vmatpush1.bf16.msra.mxu0 %v692
      %892 = vmatprep.subr.bf16.mxu0 %v691
      %893 = vmatpush1.bf16.msra.mxu0 %v690
      %894 = vmatprep.subr.bf16.mxu0 %v689
      %895 = vmatpush1.bf16.msra.mxu0 %v688
      %896 = vmatprep.subr.bf16.mxu0 %v719
      %897 = vmatpush2.bf16.msra.mxu0 %v718
      %898 = vmatprep.subr.bf16.mxu0 %v717
      %899 = vmatpush2.bf16.msra.mxu0 %v716
      %900 = vmatprep.subr.bf16.mxu0 %v715
      %901 = vmatpush2.bf16.msra.mxu0 %v714
      %902 = vmatprep.subr.bf16.mxu0 %v713
      %903 = vmatpush2.bf16.msra.mxu0 %v712
      %904 = vmatprep.subr.bf16.mxu0 %v711
      %905 = vmatpush2.bf16.msra.mxu0 %v710
      %906 = vmatprep.subr.bf16.mxu0 %v709
      %907 = vmatpush2.bf16.msra.mxu0 %v708
      %908 = vmatprep.subr.bf16.mxu0 %v707
      %909 = vmatpush2.bf16.msra.mxu0 %v706
      %910 = vmatprep.subr.bf16.mxu0 %v705
      %911 = vmatpush2.bf16.msra.mxu0 %v704
      %912 = vmatprep.mubr.bf16.mxu0 %v287
      %913 = vmatmul.mubr.bf16.gmra.mxu0 %v286
      %v914 = vpop.f32.mrf.mxu0
      %v915 = vadd.f32 %v393, %v914
      %v916 = vpop.f32.mrf.mxu0
      %v917 = vadd.f32 %v397, %v916
      %v918 = vpop.f32.mrf.mxu0
      %v919 = vadd.f32 %v393, %v918
      %v920 = vpop.f32.mrf.mxu0
      %v921 = vadd.f32 %v397, %v920
      %922 = vdwg.mxu0
      %923 = vmatprep.subr.bf16.mxu0 %v735
      %924 = vmatpush1.bf16.msra.mxu0 %v734
      %925 = vmatprep.subr.bf16.mxu0 %v733
      %926 = vmatpush1.bf16.msra.mxu0 %v732
      %927 = vmatprep.subr.bf16.mxu0 %v731
      %928 = vmatpush1.bf16.msra.mxu0 %v730
      %929 = vmatprep.subr.bf16.mxu0 %v729
      %930 = vmatpush1.bf16.msra.mxu0 %v728
      %931 = vmatprep.subr.bf16.mxu0 %v727
      %932 = vmatpush1.bf16.msra.mxu0 %v726
      %933 = vmatprep.subr.bf16.mxu0 %v725
      %934 = vmatpush1.bf16.msra.mxu0 %v724
      %935 = vmatprep.subr.bf16.mxu0 %v723
      %936 = vmatpush1.bf16.msra.mxu0 %v722
      %937 = vmatprep.subr.bf16.mxu0 %v721
      %938 = vmatpush1.bf16.msra.mxu0 %v720
      %939 = vmatprep.subr.bf16.mxu0 %v751
      %940 = vmatpush2.bf16.msra.mxu0 %v750
      %941 = vmatprep.subr.bf16.mxu0 %v749
      %942 = vmatpush2.bf16.msra.mxu0 %v748
      %943 = vmatprep.subr.bf16.mxu0 %v747
      %944 = vmatpush2.bf16.msra.mxu0 %v746
      %945 = vmatprep.subr.bf16.mxu0 %v745
      %946 = vmatpush2.bf16.msra.mxu0 %v744
      %947 = vmatprep.subr.bf16.mxu0 %v743
      %948 = vmatpush2.bf16.msra.mxu0 %v742
      %949 = vmatprep.subr.bf16.mxu0 %v741
      %950 = vmatpush2.bf16.msra.mxu0 %v740
      %951 = vmatprep.subr.bf16.mxu0 %v739
      %952 = vmatpush2.bf16.msra.mxu0 %v738
      %953 = vmatprep.subr.bf16.mxu0 %v737
      %954 = vmatpush2.bf16.msra.mxu0 %v736
      %955 = vmatprep.mubr.bf16.mxu0 %v289
      %956 = vmatmul.mubr.bf16.gmra.mxu0 %v288
      %v957 = vpop.f32.mrf.mxu0
      %v958 = vadd.f32 %v915, %v957
      %v959 = vpop.f32.mrf.mxu0
      %v960 = vadd.f32 %v917, %v959
      %v961 = vpop.f32.mrf.mxu0
      %v962 = vadd.f32 %v919, %v961
      %v963 = vpop.f32.mrf.mxu0
      %v964 = vadd.f32 %v921, %v963
      %965 = vdwg.mxu0
      %966 = vmatprep.subr.bf16.mxu0 %v767
      %967 = vmatpush1.bf16.msra.mxu0 %v766
      %968 = vmatprep.subr.bf16.mxu0 %v765
      %969 = vmatpush1.bf16.msra.mxu0 %v764
      %970 = vmatprep.subr.bf16.mxu0 %v763
      %971 = vmatpush1.bf16.msra.mxu0 %v762
      %972 = vmatprep.subr.bf16.mxu0 %v761
      %973 = vmatpush1.bf16.msra.mxu0 %v760
      %974 = vmatprep.subr.bf16.mxu0 %v759
      %975 = vmatpush1.bf16.msra.mxu0 %v758
      %976 = vmatprep.subr.bf16.mxu0 %v757
      %977 = vmatpush1.bf16.msra.mxu0 %v756
      %978 = vmatprep.subr.bf16.mxu0 %v755
      %979 = vmatpush1.bf16.msra.mxu0 %v754
      %980 = vmatprep.subr.bf16.mxu0 %v753
      %981 = vmatpush1.bf16.msra.mxu0 %v752
      %982 = vmatprep.subr.bf16.mxu0 %v783
      %983 = vmatpush2.bf16.msra.mxu0 %v782
      %984 = vmatprep.subr.bf16.mxu0 %v781
      %985 = vmatpush2.bf16.msra.mxu0 %v780
      %986 = vmatprep.subr.bf16.mxu0 %v779
      %987 = vmatpush2.bf16.msra.mxu0 %v778
      %988 = vmatprep.subr.bf16.mxu0 %v777
      %989 = vmatpush2.bf16.msra.mxu0 %v776
      %990 = vmatprep.subr.bf16.mxu0 %v775
      %991 = vmatpush2.bf16.msra.mxu0 %v774
      %992 = vmatprep.subr.bf16.mxu0 %v773
      %993 = vmatpush2.bf16.msra.mxu0 %v772
      %994 = vmatprep.subr.bf16.mxu0 %v771
      %995 = vmatpush2.bf16.msra.mxu0 %v770
      %996 = vmatprep.subr.bf16.mxu0 %v769
      %997 = vmatpush2.bf16.msra.mxu0 %v768
      %998 = vmatprep.mubr.bf16.mxu0 %v291
      %999 = vmatmul.mubr.bf16.gmra.mxu0 %v290
      %v1000 = vpop.f32.mrf.mxu0
      %v1001 = vadd.f32 %v958, %v1000
      %v1002 = vpop.f32.mrf.mxu0
      %v1003 = vadd.f32 %v960, %v1002
      %v1004 = vpop.f32.mrf.mxu0
      %v1005 = vadd.f32 %v962, %v1004
      %v1006 = vpop.f32.mrf.mxu0
      %v1007 = vadd.f32 %v964, %v1006
      %1008 = vdwg.mxu0
      %v1009 = vmul.f32 %v1001, 0.2
      %v1010 = vmul.f32 %v1003, 0.2
      %v1011 = vmul.f32 %v1005, 0.2
      %v1012 = vmul.f32 %v1007, 0.2
      %v1013 = vmax.f32 %v1001, %v1009
      %v1014 = vmax.f32 %v1003, %v1010
      %v1015 = vmax.f32 %v1005, %v1011
      %v1016 = vmax.f32 %v1007, %v1012
      %v1017 = vrot.slane %v1013, 7
      %v1018 = vrot.slane %v1014, 7
      %v1019 = vrot.slane %v1015, 7
      %v1020 = vrot.slane %v1016, 7
      %v1021 = vsel %vm264, %v1017, %v1019
      %v1022 = vsel %vm264, %v1018, %v1020
      %v1023 = vsel %vm264, %v1019, %v1017
      %v1024 = vsel %vm264, %v1020, %v1018
      %v1025 = vsel %vm256, %v1023, 0.0
      %v1026 = vsel %vm256, %v1024, 0.0
      %v1027 = vsel %vm257, %v1021, 0.0
      %v1028 = vsel %vm257, %v1022, 0.0
      %v1029 = vrot.slane %v1013, 1
      %v1030 = vrot.slane %v1014, 1
      %v1031 = vrot.slane %v1015, 1
      %v1032 = vrot.slane %v1016, 1
      %v1033 = vsel %vm277, %v1029, %v1031
      %v1034 = vsel %vm277, %v1030, %v1032
      %v1035 = vsel %vm277, %v1031, %v1029
      %v1036 = vsel %vm277, %v1032, %v1030
      %v1037 = vsel %vm258, %v1033, 0.0
      %v1038 = vsel %vm258, %v1034, 0.0
      %v1039 = vsel %vm259, %v1035, 0.0
      %v1040 = vsel %vm259, %v1036, 0.0
      %v1041 = vpack.c.bf16 %v1027, %v1025
      %v1042 = vpack.c.bf16 %v1028, %v1026
      %v1043 = vpack.c.bf16 %v1015, %v1013
      %v1044 = vpack.c.bf16 %v1016, %v1014
      %v1045 = vpack.c.bf16 %v1039, %v1037
      %v1046 = vpack.c.bf16 %v1040, %v1038
      %v1047 = vld [vmem:[%s3] sm:$0xff]
      %v1048 = vld [vmem:[%s3 + $0x8] sm:$0xff]
      %v1049 = vld [vmem:[%s3 + $0x10] sm:$0xff]
      %v1050 = vld [vmem:[%s3 + $0x18] sm:$0xff]
      %v1051 = vld [vmem:[%s3 + $0x20] sm:$0xff]
      %v1052 = vld [vmem:[%s3 + $0x28] sm:$0xff]
      %v1053 = vld [vmem:[%s3 + $0x30] sm:$0xff]
      %v1054 = vld [vmem:[%s3 + $0x38] sm:$0xff]
      %v1055 = vld [vmem:[%s3 + $0x40] sm:$0xff]
      %v1056 = vld [vmem:[%s3 + $0x48] sm:$0xff]
      %v1057 = vld [vmem:[%s3 + $0x50] sm:$0xff]
      %v1058 = vld [vmem:[%s3 + $0x58] sm:$0xff]
      %v1059 = vld [vmem:[%s3 + $0x60] sm:$0xff]
      %v1060 = vld [vmem:[%s3 + $0x68] sm:$0xff]
      %v1061 = vld [vmem:[%s3 + $0x70] sm:$0xff]
      %v1062 = vld [vmem:[%s3 + $0x78] sm:$0xff]
      %v1063 = vld [vmem:[%s3 + $0x80] sm:$0xff]
      %v1064 = vld [vmem:[%s3 + $0x88] sm:$0xff]
      %v1065 = vld [vmem:[%s3 + $0x90] sm:$0xff]
      %v1066 = vld [vmem:[%s3 + $0x98] sm:$0xff]
      %v1067 = vld [vmem:[%s3 + $0xa0] sm:$0xff]
      %v1068 = vld [vmem:[%s3 + $0xa8] sm:$0xff]
      %v1069 = vld [vmem:[%s3 + $0xb0] sm:$0xff]
      %v1070 = vld [vmem:[%s3 + $0xb8] sm:$0xff]
      %v1071 = vld [vmem:[%s3 + $0xc0] sm:$0xff]
      %v1072 = vld [vmem:[%s3 + $0xc8] sm:$0xff]
      %v1073 = vld [vmem:[%s3 + $0xd0] sm:$0xff]
      %v1074 = vld [vmem:[%s3 + $0xd8] sm:$0xff]
      %v1075 = vld [vmem:[%s3 + $0xe0] sm:$0xff]
      %v1076 = vld [vmem:[%s3 + $0xe8] sm:$0xff]
      %v1077 = vld [vmem:[%s3 + $0xf0] sm:$0xff]
      %v1078 = vld [vmem:[%s3 + $0xf8] sm:$0xff]
      %v1079 = vld [vmem:[%s3 + $0x100] sm:$0xff]
      %v1080 = vld [vmem:[%s3 + $0x108] sm:$0xff]
      %v1081 = vld [vmem:[%s3 + $0x110] sm:$0xff]
      %v1082 = vld [vmem:[%s3 + $0x118] sm:$0xff]
      %v1083 = vld [vmem:[%s3 + $0x120] sm:$0xff]
      %v1084 = vld [vmem:[%s3 + $0x128] sm:$0xff]
      %v1085 = vld [vmem:[%s3 + $0x130] sm:$0xff]
      %v1086 = vld [vmem:[%s3 + $0x138] sm:$0xff]
      %v1087 = vld [vmem:[%s3 + $0x140] sm:$0xff]
      %v1088 = vld [vmem:[%s3 + $0x148] sm:$0xff]
      %v1089 = vld [vmem:[%s3 + $0x150] sm:$0xff]
      %v1090 = vld [vmem:[%s3 + $0x158] sm:$0xff]
      %v1091 = vld [vmem:[%s3 + $0x160] sm:$0xff]
      %v1092 = vld [vmem:[%s3 + $0x168] sm:$0xff]
      %v1093 = vld [vmem:[%s3 + $0x170] sm:$0xff]
      %v1094 = vld [vmem:[%s3 + $0x178] sm:$0xff]
      %v1095 = vld [vmem:[%s3 + $0x180] sm:$0xff]
      %v1096 = vld [vmem:[%s3 + $0x188] sm:$0xff]
      %v1097 = vld [vmem:[%s3 + $0x190] sm:$0xff]
      %v1098 = vld [vmem:[%s3 + $0x198] sm:$0xff]
      %v1099 = vld [vmem:[%s3 + $0x1a0] sm:$0xff]
      %v1100 = vld [vmem:[%s3 + $0x1a8] sm:$0xff]
      %v1101 = vld [vmem:[%s3 + $0x1b0] sm:$0xff]
      %v1102 = vld [vmem:[%s3 + $0x1b8] sm:$0xff]
      %v1103 = vld [vmem:[%s3 + $0x1c0] sm:$0xff]
      %v1104 = vld [vmem:[%s3 + $0x1c8] sm:$0xff]
      %v1105 = vld [vmem:[%s3 + $0x1d0] sm:$0xff]
      %v1106 = vld [vmem:[%s3 + $0x1d8] sm:$0xff]
      %v1107 = vld [vmem:[%s3 + $0x1e0] sm:$0xff]
      %v1108 = vld [vmem:[%s3 + $0x1e8] sm:$0xff]
      %v1109 = vld [vmem:[%s3 + $0x1f0] sm:$0xff]
      %v1110 = vld [vmem:[%s3 + $0x1f8] sm:$0xff]
      %v1111 = vld [vmem:[%s3 + $0x200] sm:$0xff]
      %v1112 = vld [vmem:[%s3 + $0x208] sm:$0xff]
      %v1113 = vld [vmem:[%s3 + $0x210] sm:$0xff]
      %v1114 = vld [vmem:[%s3 + $0x218] sm:$0xff]
      %v1115 = vld [vmem:[%s3 + $0x220] sm:$0xff]
      %v1116 = vld [vmem:[%s3 + $0x228] sm:$0xff]
      %v1117 = vld [vmem:[%s3 + $0x230] sm:$0xff]
      %v1118 = vld [vmem:[%s3 + $0x238] sm:$0xff]
      %v1119 = vld [vmem:[%s3 + $0x240] sm:$0xff]
      %v1120 = vld [vmem:[%s3 + $0x248] sm:$0xff]
      %v1121 = vld [vmem:[%s3 + $0x250] sm:$0xff]
      %v1122 = vld [vmem:[%s3 + $0x258] sm:$0xff]
      %v1123 = vld [vmem:[%s3 + $0x260] sm:$0xff]
      %v1124 = vld [vmem:[%s3 + $0x268] sm:$0xff]
      %v1125 = vld [vmem:[%s3 + $0x270] sm:$0xff]
      %v1126 = vld [vmem:[%s3 + $0x278] sm:$0xff]
      %v1127 = vld [vmem:[%s3 + $0x280] sm:$0xff]
      %v1128 = vld [vmem:[%s3 + $0x288] sm:$0xff]
      %v1129 = vld [vmem:[%s3 + $0x290] sm:$0xff]
      %v1130 = vld [vmem:[%s3 + $0x298] sm:$0xff]
      %v1131 = vld [vmem:[%s3 + $0x2a0] sm:$0xff]
      %v1132 = vld [vmem:[%s3 + $0x2a8] sm:$0xff]
      %v1133 = vld [vmem:[%s3 + $0x2b0] sm:$0xff]
      %v1134 = vld [vmem:[%s3 + $0x2b8] sm:$0xff]
      %v1135 = vld [vmem:[%s3 + $0x2c0] sm:$0xff]
      %v1136 = vld [vmem:[%s3 + $0x2c8] sm:$0xff]
      %v1137 = vld [vmem:[%s3 + $0x2d0] sm:$0xff]
      %v1138 = vld [vmem:[%s3 + $0x2d8] sm:$0xff]
      %v1139 = vld [vmem:[%s3 + $0x2e0] sm:$0xff]
      %v1140 = vld [vmem:[%s3 + $0x2e8] sm:$0xff]
      %v1141 = vld [vmem:[%s3 + $0x2f0] sm:$0xff]
      %v1142 = vld [vmem:[%s3 + $0x2f8] sm:$0xff]
      %v1143 = vld [vmem:[%s4] sm:$0x3]
      %v1145 = vlaneseq
      %v1146 = vshrl.u32 %v1145, 7
      %v1147 = vsub.s32 0, %v1146
      %v1148 = vrot.slane %v1143, %v1147
      %v1149 = vlaneseq
      %v1150 = vshrl.u32 %v1149, 7
      %v1151 = vsub.s32 1, %v1150
      %v1152 = vrot.slane %v1143, %v1151
      %v1251 = vunpack.c.l.b16 %v1047
      %v1252 = vunpack.c.h.b16 %v1047
      %v1253 = vunpack.c.l.b16 %v1048
      %v1254 = vunpack.c.h.b16 %v1048
      %v1255 = vunpack.c.l.b16 %v1049
      %v1256 = vunpack.c.h.b16 %v1049
      %v1257 = vunpack.c.l.b16 %v1050
      %v1258 = vunpack.c.h.b16 %v1050
      %v1259 = vunpack.c.l.b16 %v1051
      %v1260 = vunpack.c.h.b16 %v1051
      %v1261 = vunpack.c.l.b16 %v1052
      %v1262 = vunpack.c.h.b16 %v1052
      %v1263 = vunpack.c.l.b16 %v1053
      %v1264 = vunpack.c.h.b16 %v1053
      %v1265 = vunpack.c.l.b16 %v1054
      %v1266 = vunpack.c.h.b16 %v1054
      %v1267 = vunpack.c.l.b16 %v1055
      %v1268 = vunpack.c.h.b16 %v1055
      %v1269 = vunpack.c.l.b16 %v1056
      %v1270 = vunpack.c.h.b16 %v1056
      %v1271 = vunpack.c.l.b16 %v1057
      %v1272 = vunpack.c.h.b16 %v1057
      %v1273 = vunpack.c.l.b16 %v1058
      %v1274 = vunpack.c.h.b16 %v1058
      %v1275 = vunpack.c.l.b16 %v1059
      %v1276 = vunpack.c.h.b16 %v1059
      %v1277 = vunpack.c.l.b16 %v1060
      %v1278 = vunpack.c.h.b16 %v1060
      %v1279 = vunpack.c.l.b16 %v1061
      %v1280 = vunpack.c.h.b16 %v1061
      %v1281 = vunpack.c.l.b16 %v1062
      %v1282 = vunpack.c.h.b16 %v1062
      %v1283 = vunpack.c.l.b16 %v1063
      %v1284 = vunpack.c.h.b16 %v1063
      %v1285 = vunpack.c.l.b16 %v1064
      %v1286 = vunpack.c.h.b16 %v1064
      %v1287 = vunpack.c.l.b16 %v1065
      %v1288 = vunpack.c.h.b16 %v1065
      %v1289 = vunpack.c.l.b16 %v1066
      %v1290 = vunpack.c.h.b16 %v1066
      %v1291 = vunpack.c.l.b16 %v1067
      %v1292 = vunpack.c.h.b16 %v1067
      %v1293 = vunpack.c.l.b16 %v1068
      %v1294 = vunpack.c.h.b16 %v1068
      %v1295 = vunpack.c.l.b16 %v1069
      %v1296 = vunpack.c.h.b16 %v1069
      %v1297 = vunpack.c.l.b16 %v1070
      %v1298 = vunpack.c.h.b16 %v1070
      %v1299 = vunpack.c.l.b16 %v1071
      %v1300 = vunpack.c.h.b16 %v1071
      %v1301 = vunpack.c.l.b16 %v1072
      %v1302 = vunpack.c.h.b16 %v1072
      %v1303 = vunpack.c.l.b16 %v1073
      %v1304 = vunpack.c.h.b16 %v1073
      %v1305 = vunpack.c.l.b16 %v1074
      %v1306 = vunpack.c.h.b16 %v1074
      %v1307 = vunpack.c.l.b16 %v1075
      %v1308 = vunpack.c.h.b16 %v1075
      %v1309 = vunpack.c.l.b16 %v1076
      %v1310 = vunpack.c.h.b16 %v1076
      %v1311 = vunpack.c.l.b16 %v1077
      %v1312 = vunpack.c.h.b16 %v1077
      %v1313 = vunpack.c.l.b16 %v1078
      %v1314 = vunpack.c.h.b16 %v1078
      %v1315 = vunpack.c.l.b16 %v1079
      %v1316 = vunpack.c.h.b16 %v1079
      %v1317 = vunpack.c.l.b16 %v1080
      %v1318 = vunpack.c.h.b16 %v1080
      %v1319 = vunpack.c.l.b16 %v1081
      %v1320 = vunpack.c.h.b16 %v1081
      %v1321 = vunpack.c.l.b16 %v1082
      %v1322 = vunpack.c.h.b16 %v1082
      %v1323 = vunpack.c.l.b16 %v1083
      %v1324 = vunpack.c.h.b16 %v1083
      %v1325 = vunpack.c.l.b16 %v1084
      %v1326 = vunpack.c.h.b16 %v1084
      %v1327 = vunpack.c.l.b16 %v1085
      %v1328 = vunpack.c.h.b16 %v1085
      %v1329 = vunpack.c.l.b16 %v1086
      %v1330 = vunpack.c.h.b16 %v1086
      %v1331 = vunpack.c.l.b16 %v1087
      %v1332 = vunpack.c.h.b16 %v1087
      %v1333 = vunpack.c.l.b16 %v1088
      %v1334 = vunpack.c.h.b16 %v1088
      %v1335 = vunpack.c.l.b16 %v1089
      %v1336 = vunpack.c.h.b16 %v1089
      %v1337 = vunpack.c.l.b16 %v1090
      %v1338 = vunpack.c.h.b16 %v1090
      %v1339 = vunpack.c.l.b16 %v1091
      %v1340 = vunpack.c.h.b16 %v1091
      %v1341 = vunpack.c.l.b16 %v1092
      %v1342 = vunpack.c.h.b16 %v1092
      %v1343 = vunpack.c.l.b16 %v1093
      %v1344 = vunpack.c.h.b16 %v1093
      %v1345 = vunpack.c.l.b16 %v1094
      %v1346 = vunpack.c.h.b16 %v1094
      %v1347 = vunpack.c.l.b16 %v1095
      %v1348 = vunpack.c.h.b16 %v1095
      %v1349 = vunpack.c.l.b16 %v1096
      %v1350 = vunpack.c.h.b16 %v1096
      %v1351 = vunpack.c.l.b16 %v1097
      %v1352 = vunpack.c.h.b16 %v1097
      %v1353 = vunpack.c.l.b16 %v1098
      %v1354 = vunpack.c.h.b16 %v1098
      %v1355 = vunpack.c.l.b16 %v1099
      %v1356 = vunpack.c.h.b16 %v1099
      %v1357 = vunpack.c.l.b16 %v1100
      %v1358 = vunpack.c.h.b16 %v1100
      %v1359 = vunpack.c.l.b16 %v1101
      %v1360 = vunpack.c.h.b16 %v1101
      %v1361 = vunpack.c.l.b16 %v1102
      %v1362 = vunpack.c.h.b16 %v1102
      %v1363 = vunpack.c.l.b16 %v1103
      %v1364 = vunpack.c.h.b16 %v1103
      %v1365 = vunpack.c.l.b16 %v1104
      %v1366 = vunpack.c.h.b16 %v1104
      %v1367 = vunpack.c.l.b16 %v1105
      %v1368 = vunpack.c.h.b16 %v1105
      %v1369 = vunpack.c.l.b16 %v1106
      %v1370 = vunpack.c.h.b16 %v1106
      %v1371 = vunpack.c.l.b16 %v1107
      %v1372 = vunpack.c.h.b16 %v1107
      %v1373 = vunpack.c.l.b16 %v1108
      %v1374 = vunpack.c.h.b16 %v1108
      %v1375 = vunpack.c.l.b16 %v1109
      %v1376 = vunpack.c.h.b16 %v1109
      %v1377 = vunpack.c.l.b16 %v1110
      %v1378 = vunpack.c.h.b16 %v1110
      %v1379 = vunpack.c.l.b16 %v1111
      %v1380 = vunpack.c.h.b16 %v1111
      %v1381 = vunpack.c.l.b16 %v1112
      %v1382 = vunpack.c.h.b16 %v1112
      %v1383 = vunpack.c.l.b16 %v1113
      %v1384 = vunpack.c.h.b16 %v1113
      %v1385 = vunpack.c.l.b16 %v1114
      %v1386 = vunpack.c.h.b16 %v1114
      %v1387 = vunpack.c.l.b16 %v1115
      %v1388 = vunpack.c.h.b16 %v1115
      %v1389 = vunpack.c.l.b16 %v1116
      %v1390 = vunpack.c.h.b16 %v1116
      %v1391 = vunpack.c.l.b16 %v1117
      %v1392 = vunpack.c.h.b16 %v1117
      %v1393 = vunpack.c.l.b16 %v1118
      %v1394 = vunpack.c.h.b16 %v1118
      %v1395 = vunpack.c.l.b16 %v1119
      %v1396 = vunpack.c.h.b16 %v1119
      %v1397 = vunpack.c.l.b16 %v1120
      %v1398 = vunpack.c.h.b16 %v1120
      %v1399 = vunpack.c.l.b16 %v1121
      %v1400 = vunpack.c.h.b16 %v1121
      %v1401 = vunpack.c.l.b16 %v1122
      %v1402 = vunpack.c.h.b16 %v1122
      %v1403 = vunpack.c.l.b16 %v1123
      %v1404 = vunpack.c.h.b16 %v1123
      %v1405 = vunpack.c.l.b16 %v1124
      %v1406 = vunpack.c.h.b16 %v1124
      %v1407 = vunpack.c.l.b16 %v1125
      %v1408 = vunpack.c.h.b16 %v1125
      %v1409 = vunpack.c.l.b16 %v1126
      %v1410 = vunpack.c.h.b16 %v1126
      %v1411 = vunpack.c.l.b16 %v1127
      %v1412 = vunpack.c.h.b16 %v1127
      %v1413 = vunpack.c.l.b16 %v1128
      %v1414 = vunpack.c.h.b16 %v1128
      %v1415 = vunpack.c.l.b16 %v1129
      %v1416 = vunpack.c.h.b16 %v1129
      %v1417 = vunpack.c.l.b16 %v1130
      %v1418 = vunpack.c.h.b16 %v1130
      %v1419 = vunpack.c.l.b16 %v1131
      %v1420 = vunpack.c.h.b16 %v1131
      %v1421 = vunpack.c.l.b16 %v1132
      %v1422 = vunpack.c.h.b16 %v1132
      %v1423 = vunpack.c.l.b16 %v1133
      %v1424 = vunpack.c.h.b16 %v1133
      %v1425 = vunpack.c.l.b16 %v1134
      %v1426 = vunpack.c.h.b16 %v1134
      %v1427 = vunpack.c.l.b16 %v1135
      %v1428 = vunpack.c.h.b16 %v1135
      %v1429 = vunpack.c.l.b16 %v1136
      %v1430 = vunpack.c.h.b16 %v1136
      %v1431 = vunpack.c.l.b16 %v1137
      %v1432 = vunpack.c.h.b16 %v1137
      %v1433 = vunpack.c.l.b16 %v1138
      %v1434 = vunpack.c.h.b16 %v1138
      %v1435 = vunpack.c.l.b16 %v1139
      %v1436 = vunpack.c.h.b16 %v1139
      %v1437 = vunpack.c.l.b16 %v1140
      %v1438 = vunpack.c.h.b16 %v1140
      %v1439 = vunpack.c.l.b16 %v1141
      %v1440 = vunpack.c.h.b16 %v1141
      %v1441 = vunpack.c.l.b16 %v1142
      %v1442 = vunpack.c.h.b16 %v1142
      %v1443 = vpack.c.b16 %v1253, %v1251
      %v1444 = vpack.c.b16 %v1254, %v1252
      %v1445 = vpack.c.b16 %v1257, %v1255
      %v1446 = vpack.c.b16 %v1258, %v1256
      %v1447 = vpack.c.b16 %v1261, %v1259
      %v1448 = vpack.c.b16 %v1262, %v1260
      %v1449 = vpack.c.b16 %v1265, %v1263
      %v1450 = vpack.c.b16 %v1266, %v1264
      %v1451 = vpack.c.b16 %v1269, %v1267
      %v1452 = vpack.c.b16 %v1270, %v1268
      %v1453 = vpack.c.b16 %v1273, %v1271
      %v1454 = vpack.c.b16 %v1274, %v1272
      %v1455 = vpack.c.b16 %v1277, %v1275
      %v1456 = vpack.c.b16 %v1278, %v1276
      %v1457 = vpack.c.b16 %v1281, %v1279
      %v1458 = vpack.c.b16 %v1282, %v1280
      %v1459 = vpack.c.b16 %v1285, %v1283
      %v1460 = vpack.c.b16 %v1286, %v1284
      %v1461 = vpack.c.b16 %v1289, %v1287
      %v1462 = vpack.c.b16 %v1290, %v1288
      %v1463 = vpack.c.b16 %v1293, %v1291
      %v1464 = vpack.c.b16 %v1294, %v1292
      %v1465 = vpack.c.b16 %v1297, %v1295
      %v1466 = vpack.c.b16 %v1298, %v1296
      %v1467 = vpack.c.b16 %v1301, %v1299
      %v1468 = vpack.c.b16 %v1302, %v1300
      %v1469 = vpack.c.b16 %v1305, %v1303
      %v1470 = vpack.c.b16 %v1306, %v1304
      %v1471 = vpack.c.b16 %v1309, %v1307
      %v1472 = vpack.c.b16 %v1310, %v1308
      %v1473 = vpack.c.b16 %v1313, %v1311
      %v1474 = vpack.c.b16 %v1314, %v1312
      %v1475 = vpack.c.b16 %v1317, %v1315
      %v1476 = vpack.c.b16 %v1318, %v1316
      %v1477 = vpack.c.b16 %v1321, %v1319
      %v1478 = vpack.c.b16 %v1322, %v1320
      %v1479 = vpack.c.b16 %v1325, %v1323
      %v1480 = vpack.c.b16 %v1326, %v1324
      %v1481 = vpack.c.b16 %v1329, %v1327
      %v1482 = vpack.c.b16 %v1330, %v1328
      %v1483 = vpack.c.b16 %v1333, %v1331
      %v1484 = vpack.c.b16 %v1334, %v1332
      %v1485 = vpack.c.b16 %v1337, %v1335
      %v1486 = vpack.c.b16 %v1338, %v1336
      %v1487 = vpack.c.b16 %v1341, %v1339
      %v1488 = vpack.c.b16 %v1342, %v1340
      %v1489 = vpack.c.b16 %v1345, %v1343
      %v1490 = vpack.c.b16 %v1346, %v1344
      %v1491 = vpack.c.b16 %v1349, %v1347
      %v1492 = vpack.c.b16 %v1350, %v1348
      %v1493 = vpack.c.b16 %v1353, %v1351
      %v1494 = vpack.c.b16 %v1354, %v1352
      %v1495 = vpack.c.b16 %v1357, %v1355
      %v1496 = vpack.c.b16 %v1358, %v1356
      %v1497 = vpack.c.b16 %v1361, %v1359
      %v1498 = vpack.c.b16 %v1362, %v1360
      %v1499 = vpack.c.b16 %v1365, %v1363
      %v1500 = vpack.c.b16 %v1366, %v1364
      %v1501 = vpack.c.b16 %v1369, %v1367
      %v1502 = vpack.c.b16 %v1370, %v1368
      %v1503 = vpack.c.b16 %v1373, %v1371
      %v1504 = vpack.c.b16 %v1374, %v1372
      %v1505 = vpack.c.b16 %v1377, %v1375
      %v1506 = vpack.c.b16 %v1378, %v1376
      %v1507 = vpack.c.b16 %v1381, %v1379
      %v1508 = vpack.c.b16 %v1382, %v1380
      %v1509 = vpack.c.b16 %v1385, %v1383
      %v1510 = vpack.c.b16 %v1386, %v1384
      %v1511 = vpack.c.b16 %v1389, %v1387
      %v1512 = vpack.c.b16 %v1390, %v1388
      %v1513 = vpack.c.b16 %v1393, %v1391
      %v1514 = vpack.c.b16 %v1394, %v1392
      %v1515 = vpack.c.b16 %v1397, %v1395
      %v1516 = vpack.c.b16 %v1398, %v1396
      %v1517 = vpack.c.b16 %v1401, %v1399
      %v1518 = vpack.c.b16 %v1402, %v1400
      %v1519 = vpack.c.b16 %v1405, %v1403
      %v1520 = vpack.c.b16 %v1406, %v1404
      %v1521 = vpack.c.b16 %v1409, %v1407
      %v1522 = vpack.c.b16 %v1410, %v1408
      %v1523 = vpack.c.b16 %v1413, %v1411
      %v1524 = vpack.c.b16 %v1414, %v1412
      %v1525 = vpack.c.b16 %v1417, %v1415
      %v1526 = vpack.c.b16 %v1418, %v1416
      %v1527 = vpack.c.b16 %v1421, %v1419
      %v1528 = vpack.c.b16 %v1422, %v1420
      %v1529 = vpack.c.b16 %v1425, %v1423
      %v1530 = vpack.c.b16 %v1426, %v1424
      %v1531 = vpack.c.b16 %v1429, %v1427
      %v1532 = vpack.c.b16 %v1430, %v1428
      %v1533 = vpack.c.b16 %v1433, %v1431
      %v1534 = vpack.c.b16 %v1434, %v1432
      %v1535 = vpack.c.b16 %v1437, %v1435
      %v1536 = vpack.c.b16 %v1438, %v1436
      %v1537 = vpack.c.b16 %v1441, %v1439
      %v1538 = vpack.c.b16 %v1442, %v1440
      %1635 = vmatprep.subr.bf16.mxu0 %v1458
      %1636 = vmatpush1.bf16.msra.mxu0 %v1457
      %1637 = vmatprep.subr.bf16.mxu0 %v1456
      %1638 = vmatpush1.bf16.msra.mxu0 %v1455
      %1639 = vmatprep.subr.bf16.mxu0 %v1454
      %1640 = vmatpush1.bf16.msra.mxu0 %v1453
      %1641 = vmatprep.subr.bf16.mxu0 %v1452
      %1642 = vmatpush1.bf16.msra.mxu0 %v1451
      %1643 = vmatprep.subr.bf16.mxu0 %v1450
      %1644 = vmatpush1.bf16.msra.mxu0 %v1449
      %1645 = vmatprep.subr.bf16.mxu0 %v1448
      %1646 = vmatpush1.bf16.msra.mxu0 %v1447
      %1647 = vmatprep.subr.bf16.mxu0 %v1446
      %1648 = vmatpush1.bf16.msra.mxu0 %v1445
      %1649 = vmatprep.subr.bf16.mxu0 %v1444
      %1650 = vmatpush1.bf16.msra.mxu0 %v1443
      %1651 = vmatprep.subr.bf16.mxu0 %v1474
      %1652 = vmatpush2.bf16.msra.mxu0 %v1473
      %1653 = vmatprep.subr.bf16.mxu0 %v1472
      %1654 = vmatpush2.bf16.msra.mxu0 %v1471
      %1655 = vmatprep.subr.bf16.mxu0 %v1470
      %1656 = vmatpush2.bf16.msra.mxu0 %v1469
      %1657 = vmatprep.subr.bf16.mxu0 %v1468
      %1658 = vmatpush2.bf16.msra.mxu0 %v1467
      %1659 = vmatprep.subr.bf16.mxu0 %v1466
      %1660 = vmatpush2.bf16.msra.mxu0 %v1465
      %1661 = vmatprep.subr.bf16.mxu0 %v1464
      %1662 = vmatpush2.bf16.msra.mxu0 %v1463
      %1663 = vmatprep.subr.bf16.mxu0 %v1462
      %1664 = vmatpush2.bf16.msra.mxu0 %v1461
      %1665 = vmatprep.subr.bf16.mxu0 %v1460
      %1666 = vmatpush2.bf16.msra.mxu0 %v1459
      %1667 = vmatprep.mubr.bf16.mxu0 %v1042
      %1668 = vmatmul.mubr.bf16.gmra.mxu0 %v1041
      %v1669 = vpop.f32.mrf.mxu0
      %v1670 = vadd.f32 %v1148, %v1669
      %v1671 = vpop.f32.mrf.mxu0
      %v1672 = vadd.f32 %v1152, %v1671
      %v1673 = vpop.f32.mrf.mxu0
      %v1674 = vadd.f32 %v1148, %v1673
      %v1675 = vpop.f32.mrf.mxu0
      %v1676 = vadd.f32 %v1152, %v1675
      %1677 = vdwg.mxu0
      %1678 = vmatprep.subr.bf16.mxu0 %v1490
      %1679 = vmatpush1.bf16.msra.mxu0 %v1489
      %1680 = vmatprep.subr.bf16.mxu0 %v1488
      %1681 = vmatpush1.bf16.msra.mxu0 %v1487
      %1682 = vmatprep.subr.bf16.mxu0 %v1486
      %1683 = vmatpush1.bf16.msra.mxu0 %v1485
      %1684 = vmatprep.subr.bf16.mxu0 %v1484
      %1685 = vmatpush1.bf16.msra.mxu0 %v1483
      %1686 = vmatprep.subr.bf16.mxu0 %v1482
      %1687 = vmatpush1.bf16.msra.mxu0 %v1481
      %1688 = vmatprep.subr.bf16.mxu0 %v1480
      %1689 = vmatpush1.bf16.msra.mxu0 %v1479
      %1690 = vmatprep.subr.bf16.mxu0 %v1478
      %1691 = vmatpush1.bf16.msra.mxu0 %v1477
      %1692 = vmatprep.subr.bf16.mxu0 %v1476
      %1693 = vmatpush1.bf16.msra.mxu0 %v1475
      %1694 = vmatprep.subr.bf16.mxu0 %v1506
      %1695 = vmatpush2.bf16.msra.mxu0 %v1505
      %1696 = vmatprep.subr.bf16.mxu0 %v1504
      %1697 = vmatpush2.bf16.msra.mxu0 %v1503
      %1698 = vmatprep.subr.bf16.mxu0 %v1502
      %1699 = vmatpush2.bf16.msra.mxu0 %v1501
      %1700 = vmatprep.subr.bf16.mxu0 %v1500
      %1701 = vmatpush2.bf16.msra.mxu0 %v1499
      %1702 = vmatprep.subr.bf16.mxu0 %v1498
      %1703 = vmatpush2.bf16.msra.mxu0 %v1497
      %1704 = vmatprep.subr.bf16.mxu0 %v1496
      %1705 = vmatpush2.bf16.msra.mxu0 %v1495
      %1706 = vmatprep.subr.bf16.mxu0 %v1494
      %1707 = vmatpush2.bf16.msra.mxu0 %v1493
      %1708 = vmatprep.subr.bf16.mxu0 %v1492
      %1709 = vmatpush2.bf16.msra.mxu0 %v1491
      %1710 = vmatprep.mubr.bf16.mxu0 %v1044
      %1711 = vmatmul.mubr.bf16.gmra.mxu0 %v1043
      %v1712 = vpop.f32.mrf.mxu0
      %v1713 = vadd.f32 %v1670, %v1712
      %v1714 = vpop.f32.mrf.mxu0
      %v1715 = vadd.f32 %v1672, %v1714
      %v1716 = vpop.f32.mrf.mxu0
      %v1717 = vadd.f32 %v1674, %v1716
      %v1718 = vpop.f32.mrf.mxu0
      %v1719 = vadd.f32 %v1676, %v1718
      %1720 = vdwg.mxu0
      %1721 = vmatprep.subr.bf16.mxu0 %v1522
      %1722 = vmatpush1.bf16.msra.mxu0 %v1521
      %1723 = vmatprep.subr.bf16.mxu0 %v1520
      %1724 = vmatpush1.bf16.msra.mxu0 %v1519
      %1725 = vmatprep.subr.bf16.mxu0 %v1518
      %1726 = vmatpush1.bf16.msra.mxu0 %v1517
      %1727 = vmatprep.subr.bf16.mxu0 %v1516
      %1728 = vmatpush1.bf16.msra.mxu0 %v1515
      %1729 = vmatprep.subr.bf16.mxu0 %v1514
      %1730 = vmatpush1.bf16.msra.mxu0 %v1513
      %1731 = vmatprep.subr.bf16.mxu0 %v1512
      %1732 = vmatpush1.bf16.msra.mxu0 %v1511
      %1733 = vmatprep.subr.bf16.mxu0 %v1510
      %1734 = vmatpush1.bf16.msra.mxu0 %v1509
      %1735 = vmatprep.subr.bf16.mxu0 %v1508
      %1736 = vmatpush1.bf16.msra.mxu0 %v1507
      %1737 = vmatprep.subr.bf16.mxu0 %v1538
      %1738 = vmatpush2.bf16.msra.mxu0 %v1537
      %1739 = vmatprep.subr.bf16.mxu0 %v1536
      %1740 = vmatpush2.bf16.msra.mxu0 %v1535
      %1741 = vmatprep.subr.bf16.mxu0 %v1534
      %1742 = vmatpush2.bf16.msra.mxu0 %v1533
      %1743 = vmatprep.subr.bf16.mxu0 %v1532
      %1744 = vmatpush2.bf16.msra.mxu0 %v1531
      %1745 = vmatprep.subr.bf16.mxu0 %v1530
      %1746 = vmatpush2.bf16.msra.mxu0 %v1529
      %1747 = vmatprep.subr.bf16.mxu0 %v1528
      %1748 = vmatpush2.bf16.msra.mxu0 %v1527
      %1749 = vmatprep.subr.bf16.mxu0 %v1526
      %1750 = vmatpush2.bf16.msra.mxu0 %v1525
      %1751 = vmatprep.subr.bf16.mxu0 %v1524
      %1752 = vmatpush2.bf16.msra.mxu0 %v1523
      %1753 = vmatprep.mubr.bf16.mxu0 %v1046
      %1754 = vmatmul.mubr.bf16.gmra.mxu0 %v1045
      %v1755 = vpop.f32.mrf.mxu0
      %v1756 = vadd.f32 %v1713, %v1755
      %v1757 = vpop.f32.mrf.mxu0
      %v1758 = vadd.f32 %v1715, %v1757
      %v1759 = vpop.f32.mrf.mxu0
      %v1760 = vadd.f32 %v1717, %v1759
      %v1761 = vpop.f32.mrf.mxu0
      %v1762 = vadd.f32 %v1719, %v1761
      %1763 = vdwg.mxu0
      %v1764 = vadd.f32 %v1756, %v225
      %v1765 = vadd.f32 %v1758, %v226
      %v1766 = vadd.f32 %v1760, %v227
      %v1767 = vadd.f32 %v1762, %v228
      %1768 = vst [vmem:[%s224] sm:$0xff] %v1764
      %1769 = vst [vmem:[%s224 + $0x8] sm:$0xff] %v1765
      %1770 = vst [vmem:[%s224 + $0x10] sm:$0xff] %v1766
      %1771 = vst [vmem:[%s224 + $0x18] sm:$0xff] %v1767
      %p1772 = scmp.lt.s32.totalorder %s16, 1
      %s1773 = scalar_select %p1772, %s16, 1
      %s1774 = smul.addr %s1773, 4
      %s1775 = smul.addr %s1774, 8
      %s1776 = scalar_lea.vmem %s5, %s1775
      // Predicated region
      $region41: #{resblock_nhwc.1} parent=39 // pred_check
        %p1777 = pneg %p144
      $region42: #{resblock_nhwc.1} parent=39 // pred_check_branch
        %1779 = sbr.rel (%p1777) target = $region44
      $region43: #{resblock_nhwc.1} parent=39 // pred_region
        _
      $region44: #{resblock_nhwc.1} parent=39 // pred_fallthru
        _
    $region40: #{resblock_nhwc.1} parent=5 // pred_fallthru
      _
    %p1780 = scmp.le.s32.totalorder 2, %s11
    // Predicated region
    $region45: #{resblock_nhwc.1} parent=5 // pred_check
      %p1781 = pneg %p1780
    $region46: #{resblock_nhwc.1} parent=5 // pred_check_branch
      %1783 = sbr.rel (%p1781) target = $region48
    $region47: #{resblock_nhwc.1} parent=5 // pred_region
      %s1784 = ssub.s32 %s11, 2
      // Predicated region
      $region49: #{resblock_nhwc.1} parent=47 // pred_check
        %p1785 = pneg %p150
      $region50: #{resblock_nhwc.1} parent=47 // pred_check_branch
        %1787 = sbr.rel (%p1785) target = $region52
      $region51: #{resblock_nhwc.1} parent=47 // pred_region
        %p1788 = scmp.lt.s32.totalorder %s17, 1
        %s1789 = scalar_select %p1788, %s17, 1
        %s1790 = smul.addr %s1789, 4
        %s1791 = smul.addr %s1790, 8
        %s1792 = scalar_lea.vmem %s5, %s1791
      $region52: #{resblock_nhwc.1} parent=47 // pred_fallthru
        _
    $region48: #{resblock_nhwc.1} parent=5 // pred_fallthru
      _
  $region6: #{resblock_nhwc.1} parent=0 // loop_footer
    %s15 = sadd.s32 1, %s11
  $region7: #{resblock_nhwc.1} parent=0 // loop_footer_branch
    %10 = sbr.rel target = $region3
  $region8: #{resblock_nhwc.1} parent=0 // loop_exit
    _

</llo_original>
